<compile_context>
chip_gen: v5e
topology: v5e:2x2
jax: 0.10.0
libtpu: 0.0.40
codegen_flags: <defaults>
</compile_context>

<pallas_src>
import functools

import jax
import jax.numpy as jnp
from jax.experimental import pallas as pl
from jax.experimental.pallas import tpu as pltpu


# ----------------------------- helpers -------------------------------------


def _pick_tile(dim, cap, align):
    """Largest tile <= cap dividing dim; prefer `align`-aligned tiles."""
    if dim <= cap:
        return dim
    fallback = None
    for t in range(cap, 0, -1):
        if dim % t == 0:
            if t % align == 0:
                return t
            if fallback is None:
                fallback = t
    return fallback if fallback is not None else dim


# ----------------------------- tiled matmul kernels -------------------------


def _matmul_kernel(x_ref, w_ref, o_ref, acc_ref):
    @pl.when(pl.program_id(2) == 0)
    def _init():
        acc_ref[...] = jnp.zeros_like(acc_ref)

    acc_ref[...] += jnp.dot(
        x_ref[...], w_ref[...], preferred_element_type=jnp.float32
    )

    @pl.when(pl.program_id(2) == pl.num_programs(2) - 1)
    def _finalize():
        o_ref[...] = acc_ref[...].astype(o_ref.dtype)


def _matmul_bias_kernel(x_ref, w_ref, b_ref, o_ref, acc_ref):
    @pl.when(pl.program_id(2) == 0)
    def _init():
        acc_ref[...] = jnp.zeros_like(acc_ref)

    acc_ref[...] += jnp.dot(
        x_ref[...], w_ref[...], preferred_element_type=jnp.float32
    )

    @pl.when(pl.program_id(2) == pl.num_programs(2) - 1)
    def _finalize():
        o_ref[...] = (acc_ref[...] + b_ref[...].astype(jnp.float32)).astype(
            o_ref.dtype
        )


def _tiled_matmul(x, w, bias=None, *, tm_cap=256, tn_cap=256, tk_cap=512):
    """x:(M,K) @ w:(K,Nd) [+ bias:(Nd,)] with an accumulator grid."""
    M, K = x.shape
    _, Nd = w.shape
    tm = _pick_tile(M, tm_cap, 8)     # second-minor dims: 8-aligned
    tn = _pick_tile(Nd, tn_cap, 128)  # minor dims: 128-aligned
    tk = _pick_tile(K, tk_cap, 128)
    grid = (M // tm, Nd // tn, K // tk)

    in_specs = [
        pl.BlockSpec((tm, tk), lambda i, j, k: (i, k)),
        pl.BlockSpec((tk, tn), lambda i, j, k: (k, j)),
    ]
    if bias is not None:
        in_specs.append(pl.BlockSpec((1, tn), lambda i, j, k: (0, j)))
        kernel = _matmul_bias_kernel
        args = (x, w, bias.reshape(1, Nd))
    else:
        kernel = _matmul_kernel
        args = (x, w)

    return pl.pallas_call(
        kernel,
        out_shape=jax.ShapeDtypeStruct((M, Nd), x.dtype),
        grid_spec=pltpu.PrefetchScalarGridSpec(
            num_scalar_prefetch=0,
            grid=grid,
            in_specs=in_specs,
            out_specs=pl.BlockSpec((tm, tn), lambda i, j, k: (i, j)),
            scratch_shapes=[pltpu.VMEM((tm, tn), jnp.float32)],
        ),
        compiler_params=pltpu.CompilerParams(
            dimension_semantics=("parallel", "parallel", "arbitrary"),
            vmem_limit_bytes=48 * 1024 * 1024,
        ),
    )(*args)


# ----------------------------- flash attention kernel ----------------------


def _flash_attn_kernel(
    q_ref, k_ref, v_ref, o_ref, m_sc, l_sc, acc_sc, *, scale, tq, tkv,
    num_heads, head_dim,
):
    """One (batch, q-tile, kv-tile) step; all heads handled per step.

    q_ref: (tq, E) slice of the packed qkv buffer (q section, all heads)
    k_ref/v_ref: (tkv, E) slices (k / v sections)
    o_ref: (tq, E) lane-dense output block of the (B, N, E) result.
    Scratch (per head): m (H,tq,1), l (H,tq,1), acc (H,tq,D), all f32.
    """
    H, D = num_heads, head_dim
    qi = pl.program_id(1)
    ki = pl.program_id(2)

    @pl.when(ki == 0)
    def _init():
        m_sc[...] = jnp.full_like(m_sc, -jnp.inf)
        l_sc[...] = jnp.zeros_like(l_sc)
        acc_sc[...] = jnp.zeros_like(acc_sc)

    q_start = qi * tq
    k_start = ki * tkv

    # Skip kv tiles strictly above the causal diagonal (~2x fewer tiles).
    @pl.when(k_start <= q_start + (tq - 1))
    def _compute():
        q = q_ref[...].astype(jnp.float32) * scale   # scale folded into Q
        k = k_ref[...].astype(jnp.float32)
        v = v_ref[...]

        # Causal mask hoisted outside the head loop (shared by all heads).
        row = q_start + jax.lax.broadcasted_iota(jnp.int32, (tq, tkv), 0)
        col = k_start + jax.lax.broadcasted_iota(jnp.int32, (tq, tkv), 1)
        causal = row >= col
        neg_big = jnp.finfo(jnp.float32).min

        for h in range(H):
            sl = slice(h * D, (h + 1) * D)
            qh = q[:, sl]
            kh = k[:, sl]
            vh = v[:, sl]
            # (tq,D) x (tkv,D) contracting last dims -> (tq,tkv); no k.T.
            s = jax.lax.dot_general(
                qh, kh, (((1,), (1,)), ((), ())),
                preferred_element_type=jnp.float32,
            )
            s = jnp.where(causal, s, neg_big)

            m_prev = m_sc[h]
            m_new = jnp.maximum(m_prev, jnp.max(s, axis=-1, keepdims=True))
            alpha = jnp.exp(m_prev - m_new)
            p = jnp.exp(s - m_new)
            l_sc[h] = alpha * l_sc[h] + jnp.sum(p, axis=-1, keepdims=True)
            acc_sc[h] = alpha * acc_sc[h] + jnp.dot(
                p.astype(vh.dtype), vh, preferred_element_type=jnp.float32
            )
            m_sc[h] = m_new

    @pl.when(ki == pl.num_programs(2) - 1)
    def _finalize():
        for h in range(H):
            inv_l = pl.reciprocal(l_sc[h], approx=True)       # EUP slot
            o_ref[:, h * D:(h + 1) * D] = (acc_sc[h] * inv_l).astype(
                o_ref.dtype
            )


def _flash_attention(qkv, B, N, E, H, D, dtype):
    # NOTE: the q/k/v input blocks slice the packed 3E axis in E-wide pieces,
    # so E must be a multiple of 128 (true for the test shapes & common GPT
    # configs).  TODO(synk): add a padded/transposed fallback for E % 128 != 0.
    scale = float(D) ** -0.5
    tq = _pick_tile(N, 256, 8)
    tkv = tq
    grid = (B, N // tq, N // tkv)

    q_spec = pl.BlockSpec((None, tq, E), lambda b, qi, ki: (b, qi, 0))
    k_spec = pl.BlockSpec((None, tkv, E), lambda b, qi, ki: (b, ki, 1))
    v_spec = pl.BlockSpec((None, tkv, E), lambda b, qi, ki: (b, ki, 2))
    o_spec = pl.BlockSpec((None, tq, E), lambda b, qi, ki: (b, qi, 0))

    kernel = functools.partial(
        _flash_attn_kernel, scale=scale, tq=tq, tkv=tkv,
        num_heads=H, head_dim=D,
    )
    return pl.pallas_call(
        kernel,
        out_shape=jax.ShapeDtypeStruct((B, N, E), dtype),
        grid_spec=pltpu.PrefetchScalarGridSpec(
            num_scalar_prefetch=0,
            grid=grid,
            in_specs=[q_spec, k_spec, v_spec],
            out_specs=o_spec,
            scratch_shapes=[
                pltpu.VMEM((H, tq, 1), jnp.float32),   # running max m
                pltpu.VMEM((H, tq, 1), jnp.float32),   # running denom l
                pltpu.VMEM((H, tq, D), jnp.float32),   # running numerator
            ],
        ),
        compiler_params=pltpu.CompilerParams(
            dimension_semantics=("parallel", "parallel", "arbitrary"),
            vmem_limit_bytes=48 * 1024 * 1024,
        ),
    )(qkv, qkv, qkv)


# -------------------- attention-weights debug path (optional) --------------


def _attn_weights_kernel(q_ref, k_ref, w_ref, *, scale, tq, num_heads,
                         head_dim):
    H, D = num_heads, head_dim
    qi = pl.program_id(1)
    q = q_ref[...].astype(jnp.float32) * scale   # (tq, E)
    k = k_ref[...].astype(jnp.float32)           # (N,  E)
    n_keys = k.shape[0]

    q_start = qi * tq
    row = q_start + jax.lax.broadcasted_iota(jnp.int32, (tq, n_keys), 0)
    col = jax.lax.broadcasted_iota(jnp.int32, (tq, n_keys), 1)
    causal = row >= col
    neg_big = jnp.finfo(jnp.float32).min

    for h in range(H):
        sl = slice(h * D, (h + 1) * D)
        s = jax.lax.dot_general(
            q[:, sl], k[:, sl], (((1,), (1,)), ((), ())),
            preferred_element_type=jnp.float32,
        )
        s = jnp.where(causal, s, neg_big)
        s = s - jnp.max(s, axis=-1, keepdims=True)
        p = jnp.exp(s)
        p = p / jnp.sum(p, axis=-1, keepdims=True)
        w_ref[h] = p.astype(w_ref.dtype)


def _attn_weights(qkv, B, N, E, H, D, dtype):
    # Debug-only path: materializes the full (B, H, N, N) softmax weights.
    scale = float(D) ** -0.5
    tq = _pick_tile(N, 256, 8)
    grid = (B, N // tq)

    q_spec = pl.BlockSpec((None, tq, E), lambda b, qi: (b, qi, 0))
    k_spec = pl.BlockSpec((None, N, E), lambda b, qi: (b, 0, 1))
    w_spec = pl.BlockSpec((None, H, tq, N), lambda b, qi: (b, 0, qi, 0))

    kernel = functools.partial(
        _attn_weights_kernel, scale=scale, tq=tq, num_heads=H, head_dim=D
    )
    return pl.pallas_call(
        kernel,
        out_shape=jax.ShapeDtypeStruct((B, H, N, N), dtype),
        grid_spec=pltpu.PrefetchScalarGridSpec(
            num_scalar_prefetch=0,
            grid=grid,
            in_specs=[q_spec, k_spec],
            out_specs=w_spec,
        ),
        compiler_params=pltpu.CompilerParams(
            dimension_semantics=("parallel", "parallel"),
            vmem_limit_bytes=48 * 1024 * 1024,
        ),
    )(qkv, qkv)


# ----------------------------- forward wrapper ------------------------------


@functools.partial(jax.jit, static_argnames=("num_heads", "return_attn_weights"))
def gpt_attention_forward(x, w_qkv, w_proj, b_proj, *, num_heads,
                          return_attn_weights=False):
    """Forward of GPTAttention (split_head=True, eval mode, no masks).

    Args:
      x:      (B, N, E) hidden states.
      w_qkv:  (E, 3E) fused projection weight (columns: q | k | v).
      w_proj: (E, E) output projection weight.
      b_proj: (E,)   output projection bias.
    Returns:
      (attn_output (B, N, E),
       attn_weights (B, H, N, N) if return_attn_weights else None)
    """
    B, N, E = x.shape
    H = num_heads
    D = E // H
    dt = x.dtype

    # 1) fused QKV projection (tiled accumulator grid; no bias).
    qkv = _tiled_matmul(x.reshape(B * N, E), w_qkv).reshape(B, N, 3 * E)

    # 2) flash-style causal attention, head split fused into BlockSpecs.
    attn_out = _flash_attention(qkv, B, N, E, H, D, dt)

    # 3) output projection with bias (tiled accumulator grid).
    out = _tiled_matmul(attn_out.reshape(B * N, E), w_proj, bias=b_proj)

    # attn_dropout / resid_dropout are identity in eval mode.
    attn_w = None
    if return_attn_weights:
        attn_w = _attn_weights(qkv, B, N, E, H, D, dt)
    return out.reshape(B, N, E), attn_w


# ----------------------------- reference (pure JAX) -------------------------


def gpt_attention_reference(x, w_qkv, w_proj, b_proj, num_heads):
    B, N, E = x.shape
    H = num_heads
    D = E // H
    hp = jax.lax.Precision.HIGHEST
    qkv = jnp.dot(x.reshape(B * N, E), w_qkv, precision=hp)
    q, k, v = jnp.split(qkv.reshape(B, N, 3 * E), 3, axis=-1)
    q = q.reshape(B, N, H, D).transpose(0, 2, 1, 3)
    k = k.reshape(B, N, H, D).transpose(0, 2, 1, 3)
    v = v.reshape(B, N, H, D).transpose(0, 2, 1, 3)
    scores = jnp.einsum("bhqd,bhkd->bhqk", q, k, precision=hp)
    scores = scores / jnp.float32(D) ** 0.5
    causal = jnp.tril(jnp.ones((N, N), dtype=bool))[None, None]
    scores = jnp.where(causal, scores, jnp.finfo(scores.dtype).min)
    w = jax.nn.softmax(scores, axis=-1)
    o = jnp.einsum("bhqk,bhkd->bhqd", w, v, precision=hp)
    o = o.transpose(0, 2, 1, 3).reshape(B * N, E)
    o = jnp.dot(o, w_proj, precision=hp) + b_proj
    return o.reshape(B, N, E), w


# ----------------------------- main -----------------------------------------


if __name__ == "__main__":
    # Small shapes consistent with the module (E a multiple of 128 so the
    # fused head-split BlockSpecs are lane-aligned).
    B, N, E, H = 2, 8, 128, 4   # batch, seq, hidden_size, num_heads

    key = jax.random.PRNGKey(0)
    k1, k2, k3, k4 = jax.random.split(key, 4)
    x = jax.random.normal(k1, (B, N, E), jnp.float32)
    w_qkv = jax.random.normal(k2, (E, 3 * E), jnp.float32) * 0.02
    w_proj = jax.random.normal(k3, (E, E), jnp.float32) * 0.02
    b_proj = jax.random.normal(k4, (E,), jnp.float32) * 0.02

    out, attn_w = gpt_attention_forward(
        x, w_qkv, w_proj, b_proj, num_heads=H, return_attn_weights=True
    )
    out, attn_w = jax.block_until_ready((out, attn_w))

    ref_out, ref_w = gpt_attention_reference(x, w_qkv, w_proj, b_proj, H)
    assert out.shape == (B, N, E) and attn_w.shape == (B, H, N, N)
    assert jnp.allclose(out, ref_out, atol=2e-3, rtol=2e-3), (
        "output mismatch, max abs err = %e"
        % float(jnp.max(jnp.abs(out - ref_out)))
    )
    assert jnp.allclose(attn_w, ref_w, atol=2e-3, rtol=2e-3), (
        "weights mismatch, max abs err = %e"
        % float(jnp.max(jnp.abs(attn_w - ref_w)))
    )

    print("KERNEL_OK")
</pallas_src>

<mosaic_0001>
module attributes {stable_mosaic.version = 11 : i64} {
  func.func @_attn_weights_kernel(%arg0: i32, %arg1: i32, %arg2: memref<1x8x128xf32, #tpu.memory_space<vmem>>, %arg3: memref<1x8x128xf32, #tpu.memory_space<vmem>>, %arg4: memref<1x4x8x8xf32, #tpu.memory_space<vmem>>) attributes {dimension_semantics = [#tpu.dimension_semantics<parallel>, #tpu.dimension_semantics<parallel>], iteration_bounds = array<i64: 2, 1>, scalar_prefetch = 0 : i64, scratch_operands = 0 : i64, tpu.core_type = #tpu.core_type<tc>, window_params = [{transform_indices = @transform_0, window_bounds = array<i64: 1, 8, 128>}, {transform_indices = @transform_1, window_bounds = array<i64: 1, 8, 128>}, {transform_indices = @transform_2, window_bounds = array<i64: 1, 4, 8, 8>}]} {
    %c0 = arith.constant 0 : index
    %c0_0 = arith.constant 0 : index
    %c0_1 = arith.constant 0 : index
    %0 = vector.load %arg2[%c0, %c0_0, %c0_1] : memref<1x8x128xf32, #tpu.memory_space<vmem>>, vector<1x8x128xf32>
    %1 = vector.shape_cast %0 : vector<1x8x128xf32> to vector<8x128xf32>
    %cst = arith.constant 0.176776692 : f32
    %2 = vector.broadcast %cst : f32 to vector<8x128xf32>
    %3 = arith.mulf %1, %2 : vector<8x128xf32>
    %c0_2 = arith.constant 0 : index
    %c0_3 = arith.constant 0 : index
    %c0_4 = arith.constant 0 : index
    %4 = vector.load %arg3[%c0_2, %c0_3, %c0_4] : memref<1x8x128xf32, #tpu.memory_space<vmem>>, vector<1x8x128xf32>
    %5 = vector.shape_cast %4 : vector<1x8x128xf32> to vector<8x128xf32>
    %c8_i32 = arith.constant 8 : i32
    %6 = arith.muli %arg1, %c8_i32 : i32
    %7 = tpu.iota {dimensions = array<i32: 0>} : vector<8x8xi32>
    %8 = vector.broadcast %6 : i32 to vector<8x8xi32>
    %9 = arith.addi %8, %7 : vector<8x8xi32>
    %10 = tpu.iota {dimensions = array<i32: 1>} : vector<8x8xi32>
    %11 = arith.cmpi sge, %9, %10 : vector<8x8xi32>
    %12 = vector.extract_strided_slice %3 {offsets = [0, 0], sizes = [8, 32], strides = [1, 1]} : vector<8x128xf32> to vector<8x32xf32>
    %13 = vector.extract_strided_slice %5 {offsets = [0, 0], sizes = [8, 32], strides = [1, 1]} : vector<8x128xf32> to vector<8x32xf32>
    %cst_5 = arith.constant dense<0.000000e+00> : vector<8x8xf32>
    %14 = tpu.matmul %12, %13, %cst_5 {dimension_numbers = #tpu.dot_dimension_numbers<[1], [1], [0], [0], [0, 0, 1, 0], [], []>} : vector<8x32xf32>, vector<8x32xf32>, vector<8x8xf32> -> vector<8x8xf32>
    %cst_6 = arith.constant -3.40282347E+38 : f32
    %15 = vector.broadcast %cst_6 : f32 to vector<8x8xf32>
    %16 = arith.select %11, %14, %15 : vector<8x8xi1>, vector<8x8xf32>
    %cst_7 = arith.constant dense<0xFF800000> : vector<8xf32>
    %17 = vector.multi_reduction <maximumf>, %16, %cst_7 [1] : vector<8x8xf32> to vector<8xf32>
    %18 = vector.shape_cast %17 : vector<8xf32> to vector<8x1xf32>
    %19 = vector.broadcast %18 : vector<8x1xf32> to vector<8x8xf32>
    %20 = arith.subf %16, %19 : vector<8x8xf32>
    %21 = math.exp %20 : vector<8x8xf32>
    %cst_8 = arith.constant dense<0.000000e+00> : vector<8xf32>
    %22 = vector.multi_reduction <add>, %21, %cst_8 [1] : vector<8x8xf32> to vector<8xf32>
    %23 = vector.shape_cast %22 : vector<8xf32> to vector<8x1xf32>
    %24 = vector.broadcast %23 : vector<8x1xf32> to vector<8x8xf32>
    %25 = arith.divf %21, %24 : vector<8x8xf32>
    %c0_9 = arith.constant 0 : index
    %c0_10 = arith.constant 0 : index
    %c0_11 = arith.constant 0 : index
    %c0_12 = arith.constant 0 : index
    %26 = vector.load %arg4[%c0_9, %c0_10, %c0_11, %c0_12] : memref<1x4x8x8xf32, #tpu.memory_space<vmem>>, vector<1x1x8x8xf32>
    %27 = vector.shape_cast %26 : vector<1x1x8x8xf32> to vector<8x8xf32>
    %28 = vector.shape_cast %25 : vector<8x8xf32> to vector<1x1x8x8xf32>
    tpu.vector_store %arg4[%c0_9, %c0_10, %c0_11, %c0_12], %28 {strides = array<i32>} : memref<1x4x8x8xf32, #tpu.memory_space<vmem>>, vector<1x1x8x8xf32>,
    %29 = vector.extract_strided_slice %3 {offsets = [0, 32], sizes = [8, 32], strides = [1, 1]} : vector<8x128xf32> to vector<8x32xf32>
    %30 = vector.extract_strided_slice %5 {offsets = [0, 32], sizes = [8, 32], strides = [1, 1]} : vector<8x128xf32> to vector<8x32xf32>
    %cst_13 = arith.constant dense<0.000000e+00> : vector<8x8xf32>
    %31 = tpu.matmul %29, %30, %cst_13 {dimension_numbers = #tpu.dot_dimension_numbers<[1], [1], [0], [0], [0, 0, 1, 0], [], []>} : vector<8x32xf32>, vector<8x32xf32>, vector<8x8xf32> -> vector<8x8xf32>
    %cst_14 = arith.constant -3.40282347E+38 : f32
    %32 = vector.broadcast %cst_14 : f32 to vector<8x8xf32>
    %33 = arith.select %11, %31, %32 : vector<8x8xi1>, vector<8x8xf32>
    %cst_15 = arith.constant dense<0xFF800000> : vector<8xf32>
    %34 = vector.multi_reduction <maximumf>, %33, %cst_15 [1] : vector<8x8xf32> to vector<8xf32>
    %35 = vector.shape_cast %34 : vector<8xf32> to vector<8x1xf32>
    %36 = vector.broadcast %35 : vector<8x1xf32> to vector<8x8xf32>
    %37 = arith.subf %33, %36 : vector<8x8xf32>
    %38 = math.exp %37 : vector<8x8xf32>
    %cst_16 = arith.constant dense<0.000000e+00> : vector<8xf32>
    %39 = vector.multi_reduction <add>, %38, %cst_16 [1] : vector<8x8xf32> to vector<8xf32>
    %40 = vector.shape_cast %39 : vector<8xf32> to vector<8x1xf32>
    %41 = vector.broadcast %40 : vector<8x1xf32> to vector<8x8xf32>
    %42 = arith.divf %38, %41 : vector<8x8xf32>
    %c0_17 = arith.constant 0 : index
    %c1 = arith.constant 1 : index
    %c0_18 = arith.constant 0 : index
    %c0_19 = arith.constant 0 : index
    %43 = vector.load %arg4[%c0_17, %c1, %c0_18, %c0_19] : memref<1x4x8x8xf32, #tpu.memory_space<vmem>>, vector<1x1x8x8xf32>
    %44 = vector.shape_cast %43 : vector<1x1x8x8xf32> to vector<8x8xf32>
    %45 = vector.shape_cast %42 : vector<8x8xf32> to vector<1x1x8x8xf32>
    tpu.vector_store %arg4[%c0_17, %c1, %c0_18, %c0_19], %45 {strides = array<i32>} : memref<1x4x8x8xf32, #tpu.memory_space<vmem>>, vector<1x1x8x8xf32>,
    %46 = vector.extract_strided_slice %3 {offsets = [0, 64], sizes = [8, 32], strides = [1, 1]} : vector<8x128xf32> to vector<8x32xf32>
    %47 = vector.extract_strided_slice %5 {offsets = [0, 64], sizes = [8, 32], strides = [1, 1]} : vector<8x128xf32> to vector<8x32xf32>
    %cst_20 = arith.constant dense<0.000000e+00> : vector<8x8xf32>
    %48 = tpu.matmul %46, %47, %cst_20 {dimension_numbers = #tpu.dot_dimension_numbers<[1], [1], [0], [0], [0, 0, 1, 0], [], []>} : vector<8x32xf32>, vector<8x32xf32>, vector<8x8xf32> -> vector<8x8xf32>
    %cst_21 = arith.constant -3.40282347E+38 : f32
    %49 = vector.broadcast %cst_21 : f32 to vector<8x8xf32>
    %50 = arith.select %11, %48, %49 : vector<8x8xi1>, vector<8x8xf32>
    %cst_22 = arith.constant dense<0xFF800000> : vector<8xf32>
    %51 = vector.multi_reduction <maximumf>, %50, %cst_22 [1] : vector<8x8xf32> to vector<8xf32>
    %52 = vector.shape_cast %51 : vector<8xf32> to vector<8x1xf32>
    %53 = vector.broadcast %52 : vector<8x1xf32> to vector<8x8xf32>
    %54 = arith.subf %50, %53 : vector<8x8xf32>
    %55 = math.exp %54 : vector<8x8xf32>
    %cst_23 = arith.constant dense<0.000000e+00> : vector<8xf32>
    %56 = vector.multi_reduction <add>, %55, %cst_23 [1] : vector<8x8xf32> to vector<8xf32>
    %57 = vector.shape_cast %56 : vector<8xf32> to vector<8x1xf32>
    %58 = vector.broadcast %57 : vector<8x1xf32> to vector<8x8xf32>
    %59 = arith.divf %55, %58 : vector<8x8xf32>
    %c0_24 = arith.constant 0 : index
    %c2 = arith.constant 2 : index
    %c0_25 = arith.constant 0 : index
    %c0_26 = arith.constant 0 : index
    %60 = vector.load %arg4[%c0_24, %c2, %c0_25, %c0_26] : memref<1x4x8x8xf32, #tpu.memory_space<vmem>>, vector<1x1x8x8xf32>
    %61 = vector.shape_cast %60 : vector<1x1x8x8xf32> to vector<8x8xf32>
    %62 = vector.shape_cast %59 : vector<8x8xf32> to vector<1x1x8x8xf32>
    tpu.vector_store %arg4[%c0_24, %c2, %c0_25, %c0_26], %62 {strides = array<i32>} : memref<1x4x8x8xf32, #tpu.memory_space<vmem>>, vector<1x1x8x8xf32>,
    %63 = vector.extract_strided_slice %3 {offsets = [0, 96], sizes = [8, 32], strides = [1, 1]} : vector<8x128xf32> to vector<8x32xf32>
    %64 = vector.extract_strided_slice %5 {offsets = [0, 96], sizes = [8, 32], strides = [1, 1]} : vector<8x128xf32> to vector<8x32xf32>
    %cst_27 = arith.constant dense<0.000000e+00> : vector<8x8xf32>
    %65 = tpu.matmul %63, %64, %cst_27 {dimension_numbers = #tpu.dot_dimension_numbers<[1], [1], [0], [0], [0, 0, 1, 0], [], []>} : vector<8x32xf32>, vector<8x32xf32>, vector<8x8xf32> -> vector<8x8xf32>
    %cst_28 = arith.constant -3.40282347E+38 : f32
    %66 = vector.broadcast %cst_28 : f32 to vector<8x8xf32>
    %67 = arith.select %11, %65, %66 : vector<8x8xi1>, vector<8x8xf32>
    %cst_29 = arith.constant dense<0xFF800000> : vector<8xf32>
    %68 = vector.multi_reduction <maximumf>, %67, %cst_29 [1] : vector<8x8xf32> to vector<8xf32>
    %69 = vector.shape_cast %68 : vector<8xf32> to vector<8x1xf32>
    %70 = vector.broadcast %69 : vector<8x1xf32> to vector<8x8xf32>
    %71 = arith.subf %67, %70 : vector<8x8xf32>
    %72 = math.exp %71 : vector<8x8xf32>
    %cst_30 = arith.constant dense<0.000000e+00> : vector<8xf32>
    %73 = vector.multi_reduction <add>, %72, %cst_30 [1] : vector<8x8xf32> to vector<8xf32>
    %74 = vector.shape_cast %73 : vector<8xf32> to vector<8x1xf32>
    %75 = vector.broadcast %74 : vector<8x1xf32> to vector<8x8xf32>
    %76 = arith.divf %72, %75 : vector<8x8xf32>
    %c0_31 = arith.constant 0 : index
    %c3 = arith.constant 3 : index
    %c0_32 = arith.constant 0 : index
    %c0_33 = arith.constant 0 : index
    %77 = vector.load %arg4[%c0_31, %c3, %c0_32, %c0_33] : memref<1x4x8x8xf32, #tpu.memory_space<vmem>>, vector<1x1x8x8xf32>
    %78 = vector.shape_cast %77 : vector<1x1x8x8xf32> to vector<8x8xf32>
    %79 = vector.shape_cast %76 : vector<8x8xf32> to vector<1x1x8x8xf32>
    tpu.vector_store %arg4[%c0_31, %c3, %c0_32, %c0_33], %79 {strides = array<i32>} : memref<1x4x8x8xf32, #tpu.memory_space<vmem>>, vector<1x1x8x8xf32>,
    return
  }
  func.func @transform_0(%arg0: i32, %arg1: i32) -> (i32, i32, i32) {
    %c0_i32 = arith.constant 0 : i32
    %c0_i32_0 = arith.constant 0 : i32
    return %arg0, %arg1, %c0_i32 : i32, i32, i32
  }
  func.func @transform_1(%arg0: i32, %arg1: i32) -> (i32, i32, i32) {
    %c0_i32 = arith.constant 0 : i32
    %c1_i32 = arith.constant 1 : i32
    %c0_i32_0 = arith.constant 0 : i32
    return %arg0, %c0_i32, %c1_i32 : i32, i32, i32
  }
  func.func @transform_2(%arg0: i32, %arg1: i32) -> (i32, i32, i32, i32) {
    %c0_i32 = arith.constant 0 : i32
    %c0_i32_0 = arith.constant 0 : i32
    %c0_i32_1 = arith.constant 0 : i32
    return %arg0, %c0_i32, %arg1, %c0_i32_0 : i32, i32, i32, i32
  }
}

module attributes {stable_mosaic.version = 11 : i64} {
  func.func @_matmul_bias_kernel(%arg0: i32, %arg1: i32, %arg2: i32, %arg3: memref<16x128xf32, #tpu.memory_space<vmem>>, %arg4: memref<128x128xf32, #tpu.memory_space<vmem>>, %arg5: memref<1x128xf32, #tpu.memory_space<vmem>>, %arg6: memref<16x128xf32, #tpu.memory_space<vmem>>, %arg7: memref<16x128xf32, #tpu.memory_space<vmem>>) attributes {dimension_semantics = [#tpu.dimension_semantics<parallel>, #tpu.dimension_semantics<parallel>, #tpu.dimension_semantics<arbitrary>], iteration_bounds = array<i64: 1, 1, 1>, scalar_prefetch = 0 : i64, scratch_operands = 1 : i64, tpu.core_type = #tpu.core_type<tc>, window_params = [{transform_indices = @transform_0, window_bounds = array<i64: 16, 128>}, {transform_indices = @transform_1, window_bounds = array<i64: 128, 128>}, {transform_indices = @transform_2, window_bounds = array<i64: 1, 128>}, {transform_indices = @transform_3, window_bounds = array<i64: 16, 128>}]} {
    %c0_i32 = arith.constant 0 : i32
    %0 = arith.cmpi eq, %arg2, %c0_i32 : i32
    %1 = arith.extui %0 : i1 to i32
    %c0_i32_0 = arith.constant 0 : i32
    %2 = arith.cmpi ne, %1, %c0_i32_0 : i32
    scf.if %2 {
      %cst_10 = arith.constant 0.000000e+00 : f32
      %12 = vector.broadcast %cst_10 : f32 to vector<16x128xf32>
      %c0_11 = arith.constant 0 : index
      %c0_12 = arith.constant 0 : index
      %13 = vector.load %arg7[%c0_11, %c0_12] : memref<16x128xf32, #tpu.memory_space<vmem>>, vector<16x128xf32>
      tpu.vector_store %arg7[%c0_11, %c0_12], %12 {strides = array<i32>} : memref<16x128xf32, #tpu.memory_space<vmem>>, vector<16x128xf32>,
    } else {
    }
    %c0 = arith.constant 0 : index
    %c0_1 = arith.constant 0 : index
    %3 = vector.load %arg7[%c0, %c0_1] : memref<16x128xf32, #tpu.memory_space<vmem>>, vector<16x128xf32>
    %c0_2 = arith.constant 0 : index
    %c0_3 = arith.constant 0 : index
    %4 = vector.load %arg3[%c0_2, %c0_3] : memref<16x128xf32, #tpu.memory_space<vmem>>, vector<16x128xf32>
    %c0_4 = arith.constant 0 : index
    %c0_5 = arith.constant 0 : index
    %5 = vector.load %arg4[%c0_4, %c0_5] : memref<128x128xf32, #tpu.memory_space<vmem>>, vector<128x128xf32>
    %cst = arith.constant dense<0.000000e+00> : vector<16x128xf32>
    %6 = tpu.matmul %4, %5, %cst {dimension_numbers = #tpu.dot_dimension_numbers<[1], [0], [0], [1], [0, 0, 1, 1], [], []>} : vector<16x128xf32>, vector<128x128xf32>, vector<16x128xf32> -> vector<16x128xf32>
    %7 = arith.addf %3, %6 : vector<16x128xf32>
    %c0_6 = arith.constant 0 : index
    %c0_7 = arith.constant 0 : index
    %8 = vector.load %arg7[%c0_6, %c0_7] : memref<16x128xf32, #tpu.memory_space<vmem>>, vector<16x128xf32>
    tpu.vector_store %arg7[%c0_6, %c0_7], %7 {strides = array<i32>} : memref<16x128xf32, #tpu.memory_space<vmem>>, vector<16x128xf32>,
    %c0_i32_8 = arith.constant 0 : i32
    %9 = arith.cmpi eq, %arg2, %c0_i32_8 : i32
    %10 = arith.extui %9 : i1 to i32
    %c0_i32_9 = arith.constant 0 : i32
    %11 = arith.cmpi ne, %10, %c0_i32_9 : i32
    scf.if %11 {
      %c0_10 = arith.constant 0 : index
      %c0_11 = arith.constant 0 : index
      %12 = vector.load %arg7[%c0_10, %c0_11] : memref<16x128xf32, #tpu.memory_space<vmem>>, vector<16x128xf32>
      %c0_12 = arith.constant 0 : index
      %c0_13 = arith.constant 0 : index
      %13 = vector.load %arg5[%c0_12, %c0_13] : memref<1x128xf32, #tpu.memory_space<vmem>>, vector<1x128xf32>
      %14 = vector.broadcast %13 : vector<1x128xf32> to vector<16x128xf32>
      %15 = arith.addf %12, %14 : vector<16x128xf32>
      %c0_14 = arith.constant 0 : index
      %c0_15 = arith.constant 0 : index
      %16 = vector.load %arg6[%c0_14, %c0_15] : memref<16x128xf32, #tpu.memory_space<vmem>>, vector<16x128xf32>
      tpu.vector_store %arg6[%c0_14, %c0_15], %15 {strides = array<i32>} : memref<16x128xf32, #tpu.memory_space<vmem>>, vector<16x128xf32>,
    } else {
    }
    return
  }
  func.func @transform_0(%arg0: i32, %arg1: i32, %arg2: i32) -> (i32, i32) {
    %c0_i32 = arith.constant 0 : i32
    return %arg0, %arg2 : i32, i32
  }
  func.func @transform_1(%arg0: i32, %arg1: i32, %arg2: i32) -> (i32, i32) {
    %c0_i32 = arith.constant 0 : i32
    return %arg2, %arg1 : i32, i32
  }
  func.func @transform_2(%arg0: i32, %arg1: i32, %arg2: i32) -> (i32, i32) {
    %c0_i32 = arith.constant 0 : i32
    %c0_i32_0 = arith.constant 0 : i32
    return %c0_i32, %arg1 : i32, i32
  }
  func.func @transform_3(%arg0: i32, %arg1: i32, %arg2: i32) -> (i32, i32) {
    %c0_i32 = arith.constant 0 : i32
    return %arg0, %arg1 : i32, i32
  }
}

module attributes {stable_mosaic.version = 11 : i64} {
  func.func @_flash_attn_kernel(%arg0: i32, %arg1: i32, %arg2: i32, %arg3: memref<1x8x128xf32, #tpu.memory_space<vmem>>, %arg4: memref<1x8x128xf32, #tpu.memory_space<vmem>>, %arg5: memref<1x8x128xf32, #tpu.memory_space<vmem>>, %arg6: memref<1x8x128xf32, #tpu.memory_space<vmem>>, %arg7: memref<4x8x1xf32, #tpu.memory_space<vmem>>, %arg8: memref<4x8x1xf32, #tpu.memory_space<vmem>>, %arg9: memref<4x8x32xf32, #tpu.memory_space<vmem>>) attributes {dimension_semantics = [#tpu.dimension_semantics<parallel>, #tpu.dimension_semantics<parallel>, #tpu.dimension_semantics<arbitrary>], iteration_bounds = array<i64: 2, 1, 1>, scalar_prefetch = 0 : i64, scratch_operands = 3 : i64, tpu.core_type = #tpu.core_type<tc>, window_params = [{transform_indices = @transform_0, window_bounds = array<i64: 1, 8, 128>}, {transform_indices = @transform_1, window_bounds = array<i64: 1, 8, 128>}, {transform_indices = @transform_2, window_bounds = array<i64: 1, 8, 128>}, {transform_indices = @transform_3, window_bounds = array<i64: 1, 8, 128>}]} {
    %c0_i32 = arith.constant 0 : i32
    %0 = arith.cmpi eq, %arg2, %c0_i32 : i32
    %1 = arith.extui %0 : i1 to i32
    %c0_i32_0 = arith.constant 0 : i32
    %2 = arith.cmpi ne, %1, %c0_i32_0 : i32
    scf.if %2 {
      %cst = arith.constant 0xFF800000 : f32
      %12 = vector.broadcast %cst : f32 to vector<4x8x1xf32>
      %c0 = arith.constant 0 : index
      %c0_5 = arith.constant 0 : index
      %c0_6 = arith.constant 0 : index
      %13 = vector.load %arg7[%c0, %c0_5, %c0_6] : memref<4x8x1xf32, #tpu.memory_space<vmem>>, vector<4x8x1xf32>
      tpu.vector_store %arg7[%c0, %c0_5, %c0_6], %12 {strides = array<i32>} : memref<4x8x1xf32, #tpu.memory_space<vmem>>, vector<4x8x1xf32>,
      %cst_7 = arith.constant 0.000000e+00 : f32
      %14 = vector.broadcast %cst_7 : f32 to vector<4x8x1xf32>
      %c0_8 = arith.constant 0 : index
      %c0_9 = arith.constant 0 : index
      %c0_10 = arith.constant 0 : index
      %15 = vector.load %arg8[%c0_8, %c0_9, %c0_10] : memref<4x8x1xf32, #tpu.memory_space<vmem>>, vector<4x8x1xf32>
      tpu.vector_store %arg8[%c0_8, %c0_9, %c0_10], %14 {strides = array<i32>} : memref<4x8x1xf32, #tpu.memory_space<vmem>>, vector<4x8x1xf32>,
      %cst_11 = arith.constant 0.000000e+00 : f32
      %16 = vector.broadcast %cst_11 : f32 to vector<4x8x32xf32>
      %c0_12 = arith.constant 0 : index
      %c0_13 = arith.constant 0 : index
      %c0_14 = arith.constant 0 : index
      %17 = vector.load %arg9[%c0_12, %c0_13, %c0_14] : memref<4x8x32xf32, #tpu.memory_space<vmem>>, vector<4x8x32xf32>
      tpu.vector_store %arg9[%c0_12, %c0_13, %c0_14], %16 {strides = array<i32>} : memref<4x8x32xf32, #tpu.memory_space<vmem>>, vector<4x8x32xf32>,
    } else {
    }
    %c8_i32 = arith.constant 8 : i32
    %3 = arith.muli %arg1, %c8_i32 : i32
    %c8_i32_1 = arith.constant 8 : i32
    %4 = arith.muli %arg2, %c8_i32_1 : i32
    %c7_i32 = arith.constant 7 : i32
    %5 = arith.addi %3, %c7_i32 : i32
    %6 = arith.cmpi sle, %4, %5 : i32
    %7 = arith.extui %6 : i1 to i32
    %c0_i32_2 = arith.constant 0 : i32
    %8 = arith.cmpi ne, %7, %c0_i32_2 : i32
    scf.if %8 {
      %c0 = arith.constant 0 : index
      %c0_5 = arith.constant 0 : index
      %c0_6 = arith.constant 0 : index
      %12 = vector.load %arg3[%c0, %c0_5, %c0_6] : memref<1x8x128xf32, #tpu.memory_space<vmem>>, vector<1x8x128xf32>
      %13 = vector.shape_cast %12 : vector<1x8x128xf32> to vector<8x128xf32>
      %cst = arith.constant 0.176776692 : f32
      %14 = vector.broadcast %cst : f32 to vector<8x128xf32>
      %15 = arith.mulf %13, %14 : vector<8x128xf32>
      %c0_7 = arith.constant 0 : index
      %c0_8 = arith.constant 0 : index
      %c0_9 = arith.constant 0 : index
      %16 = vector.load %arg4[%c0_7, %c0_8, %c0_9] : memref<1x8x128xf32, #tpu.memory_space<vmem>>, vector<1x8x128xf32>
      %17 = vector.shape_cast %16 : vector<1x8x128xf32> to vector<8x128xf32>
      %c0_10 = arith.constant 0 : index
      %c0_11 = arith.constant 0 : index
      %c0_12 = arith.constant 0 : index
      %18 = vector.load %arg5[%c0_10, %c0_11, %c0_12] : memref<1x8x128xf32, #tpu.memory_space<vmem>>, vector<1x8x128xf32>
      %19 = vector.shape_cast %18 : vector<1x8x128xf32> to vector<8x128xf32>
      %20 = tpu.iota {dimensions = array<i32: 0>} : vector<8x8xi32>
      %21 = vector.broadcast %3 : i32 to vector<8x8xi32>
      %22 = arith.addi %21, %20 : vector<8x8xi32>
      %23 = tpu.iota {dimensions = array<i32: 1>} : vector<8x8xi32>
      %24 = vector.broadcast %4 : i32 to vector<8x8xi32>
      %25 = arith.addi %24, %23 : vector<8x8xi32>
      %26 = arith.cmpi sge, %22, %25 : vector<8x8xi32>
      %27 = vector.extract_strided_slice %15 {offsets = [0, 0], sizes = [8, 32], strides = [1, 1]} : vector<8x128xf32> to vector<8x32xf32>
      %28 = vector.extract_strided_slice %17 {offsets = [0, 0], sizes = [8, 32], strides = [1, 1]} : vector<8x128xf32> to vector<8x32xf32>
      %29 = vector.extract_strided_slice %19 {offsets = [0, 0], sizes = [8, 32], strides = [1, 1]} : vector<8x128xf32> to vector<8x32xf32>
      %cst_13 = arith.constant dense<0.000000e+00> : vector<8x8xf32>
      %30 = tpu.matmul %27, %28, %cst_13 {dimension_numbers = #tpu.dot_dimension_numbers<[1], [1], [0], [0], [0, 0, 1, 0], [], []>} : vector<8x32xf32>, vector<8x32xf32>, vector<8x8xf32> -> vector<8x8xf32>
      %cst_14 = arith.constant -3.40282347E+38 : f32
      %31 = vector.broadcast %cst_14 : f32 to vector<8x8xf32>
      %32 = arith.select %26, %30, %31 : vector<8x8xi1>, vector<8x8xf32>
      %c0_15 = arith.constant 0 : index
      %c0_16 = arith.constant 0 : index
      %c0_17 = arith.constant 0 : index
      %33 = vector.load %arg7[%c0_15, %c0_16, %c0_17] : memref<4x8x1xf32, #tpu.memory_space<vmem>>, vector<1x8x1xf32>
      %34 = vector.shape_cast %33 : vector<1x8x1xf32> to vector<8x1xf32>
      %cst_18 = arith.constant dense<0xFF800000> : vector<8xf32>
      %35 = vector.multi_reduction <maximumf>, %32, %cst_18 [1] : vector<8x8xf32> to vector<8xf32>
      %36 = vector.shape_cast %35 : vector<8xf32> to vector<8x1xf32>
      %37 = arith.maximumf %34, %36 : vector<8x1xf32>
      %38 = arith.subf %34, %37 : vector<8x1xf32>
      %39 = math.exp %38 : vector<8x1xf32>
      %40 = vector.broadcast %37 : vector<8x1xf32> to vector<8x8xf32>
      %41 = arith.subf %32, %40 : vector<8x8xf32>
      %42 = math.exp %41 : vector<8x8xf32>
      %c0_19 = arith.constant 0 : index
      %c0_20 = arith.constant 0 : index
      %c0_21 = arith.constant 0 : index
      %43 = vector.load %arg8[%c0_19, %c0_20, %c0_21] : memref<4x8x1xf32, #tpu.memory_space<vmem>>, vector<1x8x1xf32>
      %44 = vector.shape_cast %43 : vector<1x8x1xf32> to vector<8x1xf32>
      %45 = arith.mulf %39, %44 : vector<8x1xf32>
      %cst_22 = arith.constant dense<0.000000e+00> : vector<8xf32>
      %46 = vector.multi_reduction <add>, %42, %cst_22 [1] : vector<8x8xf32> to vector<8xf32>
      %47 = vector.shape_cast %46 : vector<8xf32> to vector<8x1xf32>
      %48 = arith.addf %45, %47 : vector<8x1xf32>
      %c0_23 = arith.constant 0 : index
      %c0_24 = arith.constant 0 : index
      %c0_25 = arith.constant 0 : index
      %49 = vector.load %arg8[%c0_23, %c0_24, %c0_25] : memref<4x8x1xf32, #tpu.memory_space<vmem>>, vector<1x8x1xf32>
      %50 = vector.shape_cast %49 : vector<1x8x1xf32> to vector<8x1xf32>
      %51 = vector.shape_cast %48 : vector<8x1xf32> to vector<1x8x1xf32>
      tpu.vector_store %arg8[%c0_23, %c0_24, %c0_25], %51 {strides = array<i32>} : memref<4x8x1xf32, #tpu.memory_space<vmem>>, vector<1x8x1xf32>,
      %c0_26 = arith.constant 0 : index
      %c0_27 = arith.constant 0 : index
      %c0_28 = arith.constant 0 : index
      %52 = vector.load %arg9[%c0_26, %c0_27, %c0_28] : memref<4x8x32xf32, #tpu.memory_space<vmem>>, vector<1x8x32xf32>
      %53 = vector.shape_cast %52 : vector<1x8x32xf32> to vector<8x32xf32>
      %54 = vector.broadcast %39 : vector<8x1xf32> to vector<8x32xf32>
      %55 = arith.mulf %54, %53 : vector<8x32xf32>
      %cst_29 = arith.constant dense<0.000000e+00> : vector<8x32xf32>
      %56 = tpu.matmul %42, %29, %cst_29 {dimension_numbers = #tpu.dot_dimension_numbers<[1], [0], [0], [1], [0, 0, 1, 1], [], []>} : vector<8x8xf32>, vector<8x32xf32>, vector<8x32xf32> -> vector<8x32xf32>
      %57 = arith.addf %55, %56 : vector<8x32xf32>
      %c0_30 = arith.constant 0 : index
      %c0_31 = arith.constant 0 : index
      %c0_32 = arith.constant 0 : index
      %58 = vector.load %arg9[%c0_30, %c0_31, %c0_32] : memref<4x8x32xf32, #tpu.memory_space<vmem>>, vector<1x8x32xf32>
      %59 = vector.shape_cast %58 : vector<1x8x32xf32> to vector<8x32xf32>
      %60 = vector.shape_cast %57 : vector<8x32xf32> to vector<1x8x32xf32>
      tpu.vector_store %arg9[%c0_30, %c0_31, %c0_32], %60 {strides = array<i32>} : memref<4x8x32xf32, #tpu.memory_space<vmem>>, vector<1x8x32xf32>,
      %c0_33 = arith.constant 0 : index
      %c0_34 = arith.constant 0 : index
      %c0_35 = arith.constant 0 : index
      %61 = vector.load %arg7[%c0_33, %c0_34, %c0_35] : memref<4x8x1xf32, #tpu.memory_space<vmem>>, vector<1x8x1xf32>
      %62 = vector.shape_cast %61 : vector<1x8x1xf32> to vector<8x1xf32>
      %63 = vector.shape_cast %37 : vector<8x1xf32> to vector<1x8x1xf32>
      tpu.vector_store %arg7[%c0_33, %c0_34, %c0_35], %63 {strides = array<i32>} : memref<4x8x1xf32, #tpu.memory_space<vmem>>, vector<1x8x1xf32>,
      %64 = vector.extract_strided_slice %15 {offsets = [0, 32], sizes = [8, 32], strides = [1, 1]} : vector<8x128xf32> to vector<8x32xf32>
      %65 = vector.extract_strided_slice %17 {offsets = [0, 32], sizes = [8, 32], strides = [1, 1]} : vector<8x128xf32> to vector<8x32xf32>
      %66 = vector.extract_strided_slice %19 {offsets = [0, 32], sizes = [8, 32], strides = [1, 1]} : vector<8x128xf32> to vector<8x32xf32>
      %cst_36 = arith.constant dense<0.000000e+00> : vector<8x8xf32>
      %67 = tpu.matmul %64, %65, %cst_36 {dimension_numbers = #tpu.dot_dimension_numbers<[1], [1], [0], [0], [0, 0, 1, 0], [], []>} : vector<8x32xf32>, vector<8x32xf32>, vector<8x8xf32> -> vector<8x8xf32>
      %cst_37 = arith.constant -3.40282347E+38 : f32
      %68 = vector.broadcast %cst_37 : f32 to vector<8x8xf32>
      %69 = arith.select %26, %67, %68 : vector<8x8xi1>, vector<8x8xf32>
      %c1 = arith.constant 1 : index
      %c0_38 = arith.constant 0 : index
      %c0_39 = arith.constant 0 : index
      %70 = vector.load %arg7[%c1, %c0_38, %c0_39] : memref<4x8x1xf32, #tpu.memory_space<vmem>>, vector<1x8x1xf32>
      %71 = vector.shape_cast %70 : vector<1x8x1xf32> to vector<8x1xf32>
      %cst_40 = arith.constant dense<0xFF800000> : vector<8xf32>
      %72 = vector.multi_reduction <maximumf>, %69, %cst_40 [1] : vector<8x8xf32> to vector<8xf32>
      %73 = vector.shape_cast %72 : vector<8xf32> to vector<8x1xf32>
      %74 = arith.maximumf %71, %73 : vector<8x1xf32>
      %75 = arith.subf %71, %74 : vector<8x1xf32>
      %76 = math.exp %75 : vector<8x1xf32>
      %77 = vector.broadcast %74 : vector<8x1xf32> to vector<8x8xf32>
      %78 = arith.subf %69, %77 : vector<8x8xf32>
      %79 = math.exp %78 : vector<8x8xf32>
      %c1_41 = arith.constant 1 : index
      %c0_42 = arith.constant 0 : index
      %c0_43 = arith.constant 0 : index
      %80 = vector.load %arg8[%c1_41, %c0_42, %c0_43] : memref<4x8x1xf32, #tpu.memory_space<vmem>>, vector<1x8x1xf32>
      %81 = vector.shape_cast %80 : vector<1x8x1xf32> to vector<8x1xf32>
      %82 = arith.mulf %76, %81 : vector<8x1xf32>
      %cst_44 = arith.constant dense<0.000000e+00> : vector<8xf32>
      %83 = vector.multi_reduction <add>, %79, %cst_44 [1] : vector<8x8xf32> to vector<8xf32>
      %84 = vector.shape_cast %83 : vector<8xf32> to vector<8x1xf32>
      %85 = arith.addf %82, %84 : vector<8x1xf32>
      %c1_45 = arith.constant 1 : index
      %c0_46 = arith.constant 0 : index
      %c0_47 = arith.constant 0 : index
      %86 = vector.load %arg8[%c1_45, %c0_46, %c0_47] : memref<4x8x1xf32, #tpu.memory_space<vmem>>, vector<1x8x1xf32>
      %87 = vector.shape_cast %86 : vector<1x8x1xf32> to vector<8x1xf32>
      %88 = vector.shape_cast %85 : vector<8x1xf32> to vector<1x8x1xf32>
      tpu.vector_store %arg8[%c1_45, %c0_46, %c0_47], %88 {strides = array<i32>} : memref<4x8x1xf32, #tpu.memory_space<vmem>>, vector<1x8x1xf32>,
      %c1_48 = arith.constant 1 : index
      %c0_49 = arith.constant 0 : index
      %c0_50 = arith.constant 0 : index
      %89 = vector.load %arg9[%c1_48, %c0_49, %c0_50] : memref<4x8x32xf32, #tpu.memory_space<vmem>>, vector<1x8x32xf32>
      %90 = vector.shape_cast %89 : vector<1x8x32xf32> to vector<8x32xf32>
      %91 = vector.broadcast %76 : vector<8x1xf32> to vector<8x32xf32>
      %92 = arith.mulf %91, %90 : vector<8x32xf32>
      %cst_51 = arith.constant dense<0.000000e+00> : vector<8x32xf32>
      %93 = tpu.matmul %79, %66, %cst_51 {dimension_numbers = #tpu.dot_dimension_numbers<[1], [0], [0], [1], [0, 0, 1, 1], [], []>} : vector<8x8xf32>, vector<8x32xf32>, vector<8x32xf32> -> vector<8x32xf32>
      %94 = arith.addf %92, %93 : vector<8x32xf32>
      %c1_52 = arith.constant 1 : index
      %c0_53 = arith.constant 0 : index
      %c0_54 = arith.constant 0 : index
      %95 = vector.load %arg9[%c1_52, %c0_53, %c0_54] : memref<4x8x32xf32, #tpu.memory_space<vmem>>, vector<1x8x32xf32>
      %96 = vector.shape_cast %95 : vector<1x8x32xf32> to vector<8x32xf32>
      %97 = vector.shape_cast %94 : vector<8x32xf32> to vector<1x8x32xf32>
      tpu.vector_store %arg9[%c1_52, %c0_53, %c0_54], %97 {strides = array<i32>} : memref<4x8x32xf32, #tpu.memory_space<vmem>>, vector<1x8x32xf32>,
      %c1_55 = arith.constant 1 : index
      %c0_56 = arith.constant 0 : index
      %c0_57 = arith.constant 0 : index
      %98 = vector.load %arg7[%c1_55, %c0_56, %c0_57] : memref<4x8x1xf32, #tpu.memory_space<vmem>>, vector<1x8x1xf32>
      %99 = vector.shape_cast %98 : vector<1x8x1xf32> to vector<8x1xf32>
      %100 = vector.shape_cast %74 : vector<8x1xf32> to vector<1x8x1xf32>
      tpu.vector_store %arg7[%c1_55, %c0_56, %c0_57], %100 {strides = array<i32>} : memref<4x8x1xf32, #tpu.memory_space<vmem>>, vector<1x8x1xf32>,
      %101 = vector.extract_strided_slice %15 {offsets = [0, 64], sizes = [8, 32], strides = [1, 1]} : vector<8x128xf32> to vector<8x32xf32>
      %102 = vector.extract_strided_slice %17 {offsets = [0, 64], sizes = [8, 32], strides = [1, 1]} : vector<8x128xf32> to vector<8x32xf32>
      %103 = vector.extract_strided_slice %19 {offsets = [0, 64], sizes = [8, 32], strides = [1, 1]} : vector<8x128xf32> to vector<8x32xf32>
      %cst_58 = arith.constant dense<0.000000e+00> : vector<8x8xf32>
      %104 = tpu.matmul %101, %102, %cst_58 {dimension_numbers = #tpu.dot_dimension_numbers<[1], [1], [0], [0], [0, 0, 1, 0], [], []>} : vector<8x32xf32>, vector<8x32xf32>, vector<8x8xf32> -> vector<8x8xf32>
      %cst_59 = arith.constant -3.40282347E+38 : f32
      %105 = vector.broadcast %cst_59 : f32 to vector<8x8xf32>
      %106 = arith.select %26, %104, %105 : vector<8x8xi1>, vector<8x8xf32>
      %c2 = arith.constant 2 : index
      %c0_60 = arith.constant 0 : index
      %c0_61 = arith.constant 0 : index
      %107 = vector.load %arg7[%c2, %c0_60, %c0_61] : memref<4x8x1xf32, #tpu.memory_space<vmem>>, vector<1x8x1xf32>
      %108 = vector.shape_cast %107 : vector<1x8x1xf32> to vector<8x1xf32>
      %cst_62 = arith.constant dense<0xFF800000> : vector<8xf32>
      %109 = vector.multi_reduction <maximumf>, %106, %cst_62 [1] : vector<8x8xf32> to vector<8xf32>
      %110 = vector.shape_cast %109 : vector<8xf32> to vector<8x1xf32>
      %111 = arith.maximumf %108, %110 : vector<8x1xf32>
      %112 = arith.subf %108, %111 : vector<8x1xf32>
      %113 = math.exp %112 : vector<8x1xf32>
      %114 = vector.broadcast %111 : vector<8x1xf32> to vector<8x8xf32>
      %115 = arith.subf %106, %114 : vector<8x8xf32>
      %116 = math.exp %115 : vector<8x8xf32>
      %c2_63 = arith.constant 2 : index
      %c0_64 = arith.constant 0 : index
      %c0_65 = arith.constant 0 : index
      %117 = vector.load %arg8[%c2_63, %c0_64, %c0_65] : memref<4x8x1xf32, #tpu.memory_space<vmem>>, vector<1x8x1xf32>
      %118 = vector.shape_cast %117 : vector<1x8x1xf32> to vector<8x1xf32>
      %119 = arith.mulf %113, %118 : vector<8x1xf32>
      %cst_66 = arith.constant dense<0.000000e+00> : vector<8xf32>
      %120 = vector.multi_reduction <add>, %116, %cst_66 [1] : vector<8x8xf32> to vector<8xf32>
      %121 = vector.shape_cast %120 : vector<8xf32> to vector<8x1xf32>
      %122 = arith.addf %119, %121 : vector<8x1xf32>
      %c2_67 = arith.constant 2 : index
      %c0_68 = arith.constant 0 : index
      %c0_69 = arith.constant 0 : index
      %123 = vector.load %arg8[%c2_67, %c0_68, %c0_69] : memref<4x8x1xf32, #tpu.memory_space<vmem>>, vector<1x8x1xf32>
      %124 = vector.shape_cast %123 : vector<1x8x1xf32> to vector<8x1xf32>
      %125 = vector.shape_cast %122 : vector<8x1xf32> to vector<1x8x1xf32>
      tpu.vector_store %arg8[%c2_67, %c0_68, %c0_69], %125 {strides = array<i32>} : memref<4x8x1xf32, #tpu.memory_space<vmem>>, vector<1x8x1xf32>,
      %c2_70 = arith.constant 2 : index
      %c0_71 = arith.constant 0 : index
      %c0_72 = arith.constant 0 : index
      %126 = vector.load %arg9[%c2_70, %c0_71, %c0_72] : memref<4x8x32xf32, #tpu.memory_space<vmem>>, vector<1x8x32xf32>
      %127 = vector.shape_cast %126 : vector<1x8x32xf32> to vector<8x32xf32>
      %128 = vector.broadcast %113 : vector<8x1xf32> to vector<8x32xf32>
      %129 = arith.mulf %128, %127 : vector<8x32xf32>
      %cst_73 = arith.constant dense<0.000000e+00> : vector<8x32xf32>
      %130 = tpu.matmul %116, %103, %cst_73 {dimension_numbers = #tpu.dot_dimension_numbers<[1], [0], [0], [1], [0, 0, 1, 1], [], []>} : vector<8x8xf32>, vector<8x32xf32>, vector<8x32xf32> -> vector<8x32xf32>
      %131 = arith.addf %129, %130 : vector<8x32xf32>
      %c2_74 = arith.constant 2 : index
      %c0_75 = arith.constant 0 : index
      %c0_76 = arith.constant 0 : index
      %132 = vector.load %arg9[%c2_74, %c0_75, %c0_76] : memref<4x8x32xf32, #tpu.memory_space<vmem>>, vector<1x8x32xf32>
      %133 = vector.shape_cast %132 : vector<1x8x32xf32> to vector<8x32xf32>
      %134 = vector.shape_cast %131 : vector<8x32xf32> to vector<1x8x32xf32>
      tpu.vector_store %arg9[%c2_74, %c0_75, %c0_76], %134 {strides = array<i32>} : memref<4x8x32xf32, #tpu.memory_space<vmem>>, vector<1x8x32xf32>,
      %c2_77 = arith.constant 2 : index
      %c0_78 = arith.constant 0 : index
      %c0_79 = arith.constant 0 : index
      %135 = vector.load %arg7[%c2_77, %c0_78, %c0_79] : memref<4x8x1xf32, #tpu.memory_space<vmem>>, vector<1x8x1xf32>
      %136 = vector.shape_cast %135 : vector<1x8x1xf32> to vector<8x1xf32>
      %137 = vector.shape_cast %111 : vector<8x1xf32> to vector<1x8x1xf32>
      tpu.vector_store %arg7[%c2_77, %c0_78, %c0_79], %137 {strides = array<i32>} : memref<4x8x1xf32, #tpu.memory_space<vmem>>, vector<1x8x1xf32>,
      %138 = vector.extract_strided_slice %15 {offsets = [0, 96], sizes = [8, 32], strides = [1, 1]} : vector<8x128xf32> to vector<8x32xf32>
      %139 = vector.extract_strided_slice %17 {offsets = [0, 96], sizes = [8, 32], strides = [1, 1]} : vector<8x128xf32> to vector<8x32xf32>
      %140 = vector.extract_strided_slice %19 {offsets = [0, 96], sizes = [8, 32], strides = [1, 1]} : vector<8x128xf32> to vector<8x32xf32>
      %cst_80 = arith.constant dense<0.000000e+00> : vector<8x8xf32>
      %141 = tpu.matmul %138, %139, %cst_80 {dimension_numbers = #tpu.dot_dimension_numbers<[1], [1], [0], [0], [0, 0, 1, 0], [], []>} : vector<8x32xf32>, vector<8x32xf32>, vector<8x8xf32> -> vector<8x8xf32>
      %cst_81 = arith.constant -3.40282347E+38 : f32
      %142 = vector.broadcast %cst_81 : f32 to vector<8x8xf32>
      %143 = arith.select %26, %141, %142 : vector<8x8xi1>, vector<8x8xf32>
      %c3 = arith.constant 3 : index
      %c0_82 = arith.constant 0 : index
      %c0_83 = arith.constant 0 : index
      %144 = vector.load %arg7[%c3, %c0_82, %c0_83] : memref<4x8x1xf32, #tpu.memory_space<vmem>>, vector<1x8x1xf32>
      %145 = vector.shape_cast %144 : vector<1x8x1xf32> to vector<8x1xf32>
      %cst_84 = arith.constant dense<0xFF800000> : vector<8xf32>
      %146 = vector.multi_reduction <maximumf>, %143, %cst_84 [1] : vector<8x8xf32> to vector<8xf32>
      %147 = vector.shape_cast %146 : vector<8xf32> to vector<8x1xf32>
      %148 = arith.maximumf %145, %147 : vector<8x1xf32>
      %149 = arith.subf %145, %148 : vector<8x1xf32>
      %150 = math.exp %149 : vector<8x1xf32>
      %151 = vector.broadcast %148 : vector<8x1xf32> to vector<8x8xf32>
      %152 = arith.subf %143, %151 : vector<8x8xf32>
      %153 = math.exp %152 : vector<8x8xf32>
      %c3_85 = arith.constant 3 : index
      %c0_86 = arith.constant 0 : index
      %c0_87 = arith.constant 0 : index
      %154 = vector.load %arg8[%c3_85, %c0_86, %c0_87] : memref<4x8x1xf32, #tpu.memory_space<vmem>>, vector<1x8x1xf32>
      %155 = vector.shape_cast %154 : vector<1x8x1xf32> to vector<8x1xf32>
      %156 = arith.mulf %150, %155 : vector<8x1xf32>
      %cst_88 = arith.constant dense<0.000000e+00> : vector<8xf32>
      %157 = vector.multi_reduction <add>, %153, %cst_88 [1] : vector<8x8xf32> to vector<8xf32>
      %158 = vector.shape_cast %157 : vector<8xf32> to vector<8x1xf32>
      %159 = arith.addf %156, %158 : vector<8x1xf32>
      %c3_89 = arith.constant 3 : index
      %c0_90 = arith.constant 0 : index
      %c0_91 = arith.constant 0 : index
      %160 = vector.load %arg8[%c3_89, %c0_90, %c0_91] : memref<4x8x1xf32, #tpu.memory_space<vmem>>, vector<1x8x1xf32>
      %161 = vector.shape_cast %160 : vector<1x8x1xf32> to vector<8x1xf32>
      %162 = vector.shape_cast %159 : vector<8x1xf32> to vector<1x8x1xf32>
      tpu.vector_store %arg8[%c3_89, %c0_90, %c0_91], %162 {strides = array<i32>} : memref<4x8x1xf32, #tpu.memory_space<vmem>>, vector<1x8x1xf32>,
      %c3_92 = arith.constant 3 : index
      %c0_93 = arith.constant 0 : index
      %c0_94 = arith.constant 0 : index
      %163 = vector.load %arg9[%c3_92, %c0_93, %c0_94] : memref<4x8x32xf32, #tpu.memory_space<vmem>>, vector<1x8x32xf32>
      %164 = vector.shape_cast %163 : vector<1x8x32xf32> to vector<8x32xf32>
      %165 = vector.broadcast %150 : vector<8x1xf32> to vector<8x32xf32>
      %166 = arith.mulf %165, %164 : vector<8x32xf32>
      %cst_95 = arith.constant dense<0.000000e+00> : vector<8x32xf32>
      %167 = tpu.matmul %153, %140, %cst_95 {dimension_numbers = #tpu.dot_dimension_numbers<[1], [0], [0], [1], [0, 0, 1, 1], [], []>} : vector<8x8xf32>, vector<8x32xf32>, vector<8x32xf32> -> vector<8x32xf32>
      %168 = arith.addf %166, %167 : vector<8x32xf32>
      %c3_96 = arith.constant 3 : index
      %c0_97 = arith.constant 0 : index
      %c0_98 = arith.constant 0 : index
      %169 = vector.load %arg9[%c3_96, %c0_97, %c0_98] : memref<4x8x32xf32, #tpu.memory_space<vmem>>, vector<1x8x32xf32>
      %170 = vector.shape_cast %169 : vector<1x8x32xf32> to vector<8x32xf32>
      %171 = vector.shape_cast %168 : vector<8x32xf32> to vector<1x8x32xf32>
      tpu.vector_store %arg9[%c3_96, %c0_97, %c0_98], %171 {strides = array<i32>} : memref<4x8x32xf32, #tpu.memory_space<vmem>>, vector<1x8x32xf32>,
      %c3_99 = arith.constant 3 : index
      %c0_100 = arith.constant 0 : index
      %c0_101 = arith.constant 0 : index
      %172 = vector.load %arg7[%c3_99, %c0_100, %c0_101] : memref<4x8x1xf32, #tpu.memory_space<vmem>>, vector<1x8x1xf32>
      %173 = vector.shape_cast %172 : vector<1x8x1xf32> to vector<8x1xf32>
      %174 = vector.shape_cast %148 : vector<8x1xf32> to vector<1x8x1xf32>
      tpu.vector_store %arg7[%c3_99, %c0_100, %c0_101], %174 {strides = array<i32>} : memref<4x8x1xf32, #tpu.memory_space<vmem>>, vector<1x8x1xf32>,
    } else {
    }
    %c0_i32_3 = arith.constant 0 : i32
    %9 = arith.cmpi eq, %arg2, %c0_i32_3 : i32
    %10 = arith.extui %9 : i1 to i32
    %c0_i32_4 = arith.constant 0 : i32
    %11 = arith.cmpi ne, %10, %c0_i32_4 : i32
    scf.if %11 {
      %c0 = arith.constant 0 : index
      %c0_5 = arith.constant 0 : index
      %c0_6 = arith.constant 0 : index
      %12 = vector.load %arg8[%c0, %c0_5, %c0_6] : memref<4x8x1xf32, #tpu.memory_space<vmem>>, vector<1x8x1xf32>
      %13 = vector.shape_cast %12 : vector<1x8x1xf32> to vector<8x1xf32>
      %14 = tpu.reciprocal %13 {approx = true} : vector<8x1xf32> -> vector<8x1xf32>
      %c0_7 = arith.constant 0 : index
      %c0_8 = arith.constant 0 : index
      %c0_9 = arith.constant 0 : index
      %15 = vector.load %arg9[%c0_7, %c0_8, %c0_9] : memref<4x8x32xf32, #tpu.memory_space<vmem>>, vector<1x8x32xf32>
      %16 = vector.shape_cast %15 : vector<1x8x32xf32> to vector<8x32xf32>
      %17 = vector.broadcast %14 : vector<8x1xf32> to vector<8x32xf32>
      %18 = arith.mulf %16, %17 : vector<8x32xf32>
      %c0_10 = arith.constant 0 : index
      %c0_11 = arith.constant 0 : index
      %c0_12 = arith.constant 0 : index
      %19 = vector.load %arg6[%c0_10, %c0_11, %c0_12] : memref<1x8x128xf32, #tpu.memory_space<vmem>>, vector<1x8x32xf32>
      %20 = vector.shape_cast %19 : vector<1x8x32xf32> to vector<8x32xf32>
      %21 = vector.shape_cast %18 : vector<8x32xf32> to vector<1x8x32xf32>
      tpu.vector_store %arg6[%c0_10, %c0_11, %c0_12], %21 {strides = array<i32>} : memref<1x8x128xf32, #tpu.memory_space<vmem>>, vector<1x8x32xf32>,
      %c1 = arith.constant 1 : index
      %c0_13 = arith.constant 0 : index
      %c0_14 = arith.constant 0 : index
      %22 = vector.load %arg8[%c1, %c0_13, %c0_14] : memref<4x8x1xf32, #tpu.memory_space<vmem>>, vector<1x8x1xf32>
      %23 = vector.shape_cast %22 : vector<1x8x1xf32> to vector<8x1xf32>
      %24 = tpu.reciprocal %23 {approx = true} : vector<8x1xf32> -> vector<8x1xf32>
      %c1_15 = arith.constant 1 : index
      %c0_16 = arith.constant 0 : index
      %c0_17 = arith.constant 0 : index
      %25 = vector.load %arg9[%c1_15, %c0_16, %c0_17] : memref<4x8x32xf32, #tpu.memory_space<vmem>>, vector<1x8x32xf32>
      %26 = vector.shape_cast %25 : vector<1x8x32xf32> to vector<8x32xf32>
      %27 = vector.broadcast %24 : vector<8x1xf32> to vector<8x32xf32>
      %28 = arith.mulf %26, %27 : vector<8x32xf32>
      %c0_18 = arith.constant 0 : index
      %c0_19 = arith.constant 0 : index
      %c32 = arith.constant 32 : index
      %29 = vector.load %arg6[%c0_18, %c0_19, %c32] : memref<1x8x128xf32, #tpu.memory_space<vmem>>, vector<1x8x32xf32>
      %30 = vector.shape_cast %29 : vector<1x8x32xf32> to vector<8x32xf32>
      %31 = vector.shape_cast %28 : vector<8x32xf32> to vector<1x8x32xf32>
      tpu.vector_store %arg6[%c0_18, %c0_19, %c32], %31 {strides = array<i32>} : memref<1x8x128xf32, #tpu.memory_space<vmem>>, vector<1x8x32xf32>,
      %c2 = arith.constant 2 : index
      %c0_20 = arith.constant 0 : index
      %c0_21 = arith.constant 0 : index
      %32 = vector.load %arg8[%c2, %c0_20, %c0_21] : memref<4x8x1xf32, #tpu.memory_space<vmem>>, vector<1x8x1xf32>
      %33 = vector.shape_cast %32 : vector<1x8x1xf32> to vector<8x1xf32>
      %34 = tpu.reciprocal %33 {approx = true} : vector<8x1xf32> -> vector<8x1xf32>
      %c2_22 = arith.constant 2 : index
      %c0_23 = arith.constant 0 : index
      %c0_24 = arith.constant 0 : index
      %35 = vector.load %arg9[%c2_22, %c0_23, %c0_24] : memref<4x8x32xf32, #tpu.memory_space<vmem>>, vector<1x8x32xf32>
      %36 = vector.shape_cast %35 : vector<1x8x32xf32> to vector<8x32xf32>
      %37 = vector.broadcast %34 : vector<8x1xf32> to vector<8x32xf32>
      %38 = arith.mulf %36, %37 : vector<8x32xf32>
      %c0_25 = arith.constant 0 : index
      %c0_26 = arith.constant 0 : index
      %c64 = arith.constant 64 : index
      %39 = vector.load %arg6[%c0_25, %c0_26, %c64] : memref<1x8x128xf32, #tpu.memory_space<vmem>>, vector<1x8x32xf32>
      %40 = vector.shape_cast %39 : vector<1x8x32xf32> to vector<8x32xf32>
      %41 = vector.shape_cast %38 : vector<8x32xf32> to vector<1x8x32xf32>
      tpu.vector_store %arg6[%c0_25, %c0_26, %c64], %41 {strides = array<i32>} : memref<1x8x128xf32, #tpu.memory_space<vmem>>, vector<1x8x32xf32>,
      %c3 = arith.constant 3 : index
      %c0_27 = arith.constant 0 : index
      %c0_28 = arith.constant 0 : index
      %42 = vector.load %arg8[%c3, %c0_27, %c0_28] : memref<4x8x1xf32, #tpu.memory_space<vmem>>, vector<1x8x1xf32>
      %43 = vector.shape_cast %42 : vector<1x8x1xf32> to vector<8x1xf32>
      %44 = tpu.reciprocal %43 {approx = true} : vector<8x1xf32> -> vector<8x1xf32>
      %c3_29 = arith.constant 3 : index
      %c0_30 = arith.constant 0 : index
      %c0_31 = arith.constant 0 : index
      %45 = vector.load %arg9[%c3_29, %c0_30, %c0_31] : memref<4x8x32xf32, #tpu.memory_space<vmem>>, vector<1x8x32xf32>
      %46 = vector.shape_cast %45 : vector<1x8x32xf32> to vector<8x32xf32>
      %47 = vector.broadcast %44 : vector<8x1xf32> to vector<8x32xf32>
      %48 = arith.mulf %46, %47 : vector<8x32xf32>
      %c0_32 = arith.constant 0 : index
      %c0_33 = arith.constant 0 : index
      %c96 = arith.constant 96 : index
      %49 = vector.load %arg6[%c0_32, %c0_33, %c96] : memref<1x8x128xf32, #tpu.memory_space<vmem>>, vector<1x8x32xf32>
      %50 = vector.shape_cast %49 : vector<1x8x32xf32> to vector<8x32xf32>
      %51 = vector.shape_cast %48 : vector<8x32xf32> to vector<1x8x32xf32>
      tpu.vector_store %arg6[%c0_32, %c0_33, %c96], %51 {strides = array<i32>} : memref<1x8x128xf32, #tpu.memory_space<vmem>>, vector<1x8x32xf32>,
    } else {
    }
    return
  }
  func.func @transform_0(%arg0: i32, %arg1: i32, %arg2: i32) -> (i32, i32, i32) {
    %c0_i32 = arith.constant 0 : i32
    %c0_i32_0 = arith.constant 0 : i32
    return %arg0, %arg1, %c0_i32 : i32, i32, i32
  }
  func.func @transform_1(%arg0: i32, %arg1: i32, %arg2: i32) -> (i32, i32, i32) {
    %c1_i32 = arith.constant 1 : i32
    %c0_i32 = arith.constant 0 : i32
    return %arg0, %arg2, %c1_i32 : i32, i32, i32
  }
  func.func @transform_2(%arg0: i32, %arg1: i32, %arg2: i32) -> (i32, i32, i32) {
    %c2_i32 = arith.constant 2 : i32
    %c0_i32 = arith.constant 0 : i32
    return %arg0, %arg2, %c2_i32 : i32, i32, i32
  }
  func.func @transform_3(%arg0: i32, %arg1: i32, %arg2: i32) -> (i32, i32, i32) {
    %c0_i32 = arith.constant 0 : i32
    %c0_i32_0 = arith.constant 0 : i32
    return %arg0, %arg1, %c0_i32 : i32, i32, i32
  }
}

module attributes {stable_mosaic.version = 11 : i64} {
  func.func @_matmul_kernel(%arg0: i32, %arg1: i32, %arg2: i32, %arg3: memref<16x128xf32, #tpu.memory_space<vmem>>, %arg4: memref<128x128xf32, #tpu.memory_space<vmem>>, %arg5: memref<16x128xf32, #tpu.memory_space<vmem>>, %arg6: memref<16x128xf32, #tpu.memory_space<vmem>>) attributes {dimension_semantics = [#tpu.dimension_semantics<parallel>, #tpu.dimension_semantics<parallel>, #tpu.dimension_semantics<arbitrary>], iteration_bounds = array<i64: 1, 3, 1>, scalar_prefetch = 0 : i64, scratch_operands = 1 : i64, tpu.core_type = #tpu.core_type<tc>, window_params = [{transform_indices = @transform_0, window_bounds = array<i64: 16, 128>}, {transform_indices = @transform_1, window_bounds = array<i64: 128, 128>}, {transform_indices = @transform_2, window_bounds = array<i64: 16, 128>}]} {
    %c0_i32 = arith.constant 0 : i32
    %0 = arith.cmpi eq, %arg2, %c0_i32 : i32
    %1 = arith.extui %0 : i1 to i32
    %c0_i32_0 = arith.constant 0 : i32
    %2 = arith.cmpi ne, %1, %c0_i32_0 : i32
    scf.if %2 {
      %cst_10 = arith.constant 0.000000e+00 : f32
      %12 = vector.broadcast %cst_10 : f32 to vector<16x128xf32>
      %c0_11 = arith.constant 0 : index
      %c0_12 = arith.constant 0 : index
      %13 = vector.load %arg6[%c0_11, %c0_12] : memref<16x128xf32, #tpu.memory_space<vmem>>, vector<16x128xf32>
      tpu.vector_store %arg6[%c0_11, %c0_12], %12 {strides = array<i32>} : memref<16x128xf32, #tpu.memory_space<vmem>>, vector<16x128xf32>,
    } else {
    }
    %c0 = arith.constant 0 : index
    %c0_1 = arith.constant 0 : index
    %3 = vector.load %arg6[%c0, %c0_1] : memref<16x128xf32, #tpu.memory_space<vmem>>, vector<16x128xf32>
    %c0_2 = arith.constant 0 : index
    %c0_3 = arith.constant 0 : index
    %4 = vector.load %arg3[%c0_2, %c0_3] : memref<16x128xf32, #tpu.memory_space<vmem>>, vector<16x128xf32>
    %c0_4 = arith.constant 0 : index
    %c0_5 = arith.constant 0 : index
    %5 = vector.load %arg4[%c0_4, %c0_5] : memref<128x128xf32, #tpu.memory_space<vmem>>, vector<128x128xf32>
    %cst = arith.constant dense<0.000000e+00> : vector<16x128xf32>
    %6 = tpu.matmul %4, %5, %cst {dimension_numbers = #tpu.dot_dimension_numbers<[1], [0], [0], [1], [0, 0, 1, 1], [], []>} : vector<16x128xf32>, vector<128x128xf32>, vector<16x128xf32> -> vector<16x128xf32>
    %7 = arith.addf %3, %6 : vector<16x128xf32>
    %c0_6 = arith.constant 0 : index
    %c0_7 = arith.constant 0 : index
    %8 = vector.load %arg6[%c0_6, %c0_7] : memref<16x128xf32, #tpu.memory_space<vmem>>, vector<16x128xf32>
    tpu.vector_store %arg6[%c0_6, %c0_7], %7 {strides = array<i32>} : memref<16x128xf32, #tpu.memory_space<vmem>>, vector<16x128xf32>,
    %c0_i32_8 = arith.constant 0 : i32
    %9 = arith.cmpi eq, %arg2, %c0_i32_8 : i32
    %10 = arith.extui %9 : i1 to i32
    %c0_i32_9 = arith.constant 0 : i32
    %11 = arith.cmpi ne, %10, %c0_i32_9 : i32
    scf.if %11 {
      %c0_10 = arith.constant 0 : index
      %c0_11 = arith.constant 0 : index
      %12 = vector.load %arg6[%c0_10, %c0_11] : memref<16x128xf32, #tpu.memory_space<vmem>>, vector<16x128xf32>
      %c0_12 = arith.constant 0 : index
      %c0_13 = arith.constant 0 : index
      %13 = vector.load %arg5[%c0_12, %c0_13] : memref<16x128xf32, #tpu.memory_space<vmem>>, vector<16x128xf32>
      tpu.vector_store %arg5[%c0_12, %c0_13], %12 {strides = array<i32>} : memref<16x128xf32, #tpu.memory_space<vmem>>, vector<16x128xf32>,
    } else {
    }
    return
  }
  func.func @transform_0(%arg0: i32, %arg1: i32, %arg2: i32) -> (i32, i32) {
    %c0_i32 = arith.constant 0 : i32
    return %arg0, %arg2 : i32, i32
  }
  func.func @transform_1(%arg0: i32, %arg1: i32, %arg2: i32) -> (i32, i32) {
    %c0_i32 = arith.constant 0 : i32
    return %arg2, %arg1 : i32, i32
  }
  func.func @transform_2(%arg0: i32, %arg1: i32, %arg2: i32) -> (i32, i32) {
    %c0_i32 = arith.constant 0 : i32
    return %arg0, %arg1 : i32, i32
  }
}

</mosaic_0001>

<llo_original>
// kernel: gpt_attention_forward.4
$region0: #{gpt_attention_forward.4}
  #allocation0 [shape = 'u32[]', space=smem, size = 0x4, offset = 0x4, fixed_abs, tag = 'smem constant byte address 0x4 - core index']
  #allocation1 [shape = 'u32[72,128]{1,0:T(1,128)}', space=vmem, size = 0x9000, scoped, tag = 'internal scratch']
  #allocation2 [shape = 'f32[16,128]{1,0:T(8,128)}', space=vmem, size = 0x2000, scoped, tag = 'scratch operand']
  %s0 = inlined_call_operand.hbm [shape: f32[16,128], index: 0, kind: input, shape index: {}]
  %s1 = inlined_call_operand.hbm [shape: f32[128,384], index: 1, kind: input, shape index: {}]
  %s2 = inlined_call_operand.vmem [shape: f32[16,384], index: 2, kind: output, shape index: {}]
  %s3 = sld [smem:[#allocation0]]
  $region91: #{gpt_attention_forward.4} parent=0
    _
  %s5 = ssub.s32 1, %s3
  %s6 = scalar_select 0, %s5, %s3
  $region1: #{gpt_attention_forward.4} parent=0
    #allocation3 [shape = 'u8[8192]{0}', space=vmem, size = 0x2000, scoped, tag = 'input window, operand 0, single buffered']
    #allocation4 [shape = 's32[2]{0}', space=sflag, size = 0x8, scoped, tag = 'scoped memory for gpt_attention_forward.4']
    #allocation5 [shape = 'u8[131072]{0}', space=vmem, size = 0x20000, scoped, tag = 'input window, operand 1']
    #allocation6 [shape = 's32[2]{0}', space=sflag, size = 0x8, scoped, tag = 'scoped memory for gpt_attention_forward.4']
    #allocation7 [shape = 'u8[16384]{0}', space=vmem, size = 0x4000, scoped, tag = 'output window, operand 0']
    %7 = vsyncpa [#allocation4], 0
    %8 = vsyncpa [#allocation6], 0
    %s9 = scalar_lea.sflag [#allocation6], 1
    %10 = vsyncpa %s9, 0
    loop: start=0, step=1, limit=5
    $region2: #{gpt_attention_forward.4} parent=1 // loop_pre_header
      _
    $region3: #{gpt_attention_forward.4} parent=1 // loop_header
      %s12 = sphi 0, %s16
      %p13 = scmp.ge.s32.totalorder %s12, 5
      %s19 = sphi 0, %s38
      %s20 = sphi 0, %s34
      %s21 = sphi 0, %s30
      %s22 = sphi 0, %s19
      %s23 = sphi 0, %s20
      %s24 = sphi 0, %s21
      %s25 = sphi 0, %s22
      %s26 = sphi 0, %s23
      %s27 = sphi 0, %s24
      %s43 = sphi 0, %s45
      %s46 = sphi 0, %s43
      %s47 = sphi 0, %s46
      %s63 = sphi 0, %s47
      %s71 = sphi 0, %s73
      %s74 = sphi 0, %s71
      %s75 = sphi 0, %s74
      %s91 = sphi 0, %s75
      %s99 = sphi 0, %s101
      %s102 = sphi 0, %s99
      %s103 = sphi 0, %s102
      %s119 = sphi 0, %s103
    $region4: #{gpt_attention_forward.4} parent=1 // loop_header_branch
      %15 = sbr.rel (%p13) target = $region8
    $region5: #{gpt_attention_forward.4} parent=1 // loop_body
      %s17 = ssub.s32 %s12, 1
      %s18 = ssub.s32 %s12, 2
      %s28 = sadd.s32 1, %s21
      %p29 = scmp.ge.s32.totalorder %s28, 1
      %s30 = scalar_select %p29, 0, %s28
      %s31 = sadd.s32 1, %s20
      %s32 = scalar_select %p29, %s31, %s20
      %p33 = scmp.ge.s32.totalorder %s32, 3
      %s34 = scalar_select %p33, 0, %s32
      %s35 = sadd.s32 1, %s19
      %s36 = scalar_select %p33, %s35, %s19
      %p37 = scmp.ge.s32.totalorder %s36, 1
      %s38 = scalar_select %p37, 0, %s36
      %s39 = ssub.s32 %s19, %s38
      %s40 = ssub.s32 %s21, %s30
      %s41 = sor.u32 %s39, %s40
      %p42 = scmp.eq.s32.totalorder %s41, 0
      %s44 = sadd.s32 %s43, 1
      %s45 = scalar_select %p42, %s43, %s44
      %p48 = pneg %p42
      %p49 = scmp.eq.s32.totalorder %s12, 2
      %p50 = por %p48, %p49
      %p51 = scmp.ne.s32.totalorder %s43, %s46
      %p52 = scmp.eq.s32.totalorder %s12, 0
      %p53 = por %p51, %p52
      %p54 = scmp.ne.s32.totalorder %s43, %s46
      %p55 = scmp.eq.s32.totalorder %s17, 2
      %p56 = por %p54, %p55
      %p57 = scmp.ne.s32.totalorder %s46, %s47
      %p58 = scmp.eq.s32.totalorder %s17, 0
      %p59 = por %p57, %p58
      %p60 = scmp.ne.s32.totalorder %s46, %s47
      %p61 = scmp.eq.s32.totalorder %s18, 2
      %p62 = por %p60, %p61
      %p64 = scmp.ne.s32.totalorder %s47, %s63
      %p65 = scmp.eq.s32.totalorder %s18, 0
      %p66 = por %p64, %p65
      %s67 = ssub.s32 %s21, %s30
      %s68 = ssub.s32 %s20, %s34
      %s69 = sor.u32 %s67, %s68
      %p70 = scmp.eq.s32.totalorder %s69, 0
      %s72 = sadd.s32 %s71, 1
      %s73 = scalar_select %p70, %s71, %s72
      %p76 = pneg %p70
      %p77 = scmp.eq.s32.totalorder %s12, 2
      %p78 = por %p76, %p77
      %p79 = scmp.ne.s32.totalorder %s71, %s74
      %p80 = scmp.eq.s32.totalorder %s12, 0
      %p81 = por %p79, %p80
      %p82 = scmp.ne.s32.totalorder %s71, %s74
      %p83 = scmp.eq.s32.totalorder %s17, 2
      %p84 = por %p82, %p83
      %p85 = scmp.ne.s32.totalorder %s74, %s75
      %p86 = scmp.eq.s32.totalorder %s17, 0
      %p87 = por %p85, %p86
      %p88 = scmp.ne.s32.totalorder %s74, %s75
      %p89 = scmp.eq.s32.totalorder %s18, 2
      %p90 = por %p88, %p89
      %p92 = scmp.ne.s32.totalorder %s75, %s91
      %p93 = scmp.eq.s32.totalorder %s18, 0
      %p94 = por %p92, %p93
      %s95 = ssub.s32 %s19, %s38
      %s96 = ssub.s32 %s20, %s34
      %s97 = sor.u32 %s95, %s96
      %p98 = scmp.eq.s32.totalorder %s97, 0
      %s100 = sadd.s32 %s99, 1
      %s101 = scalar_select %p98, %s99, %s100
      %p104 = pneg %p98
      %p105 = scmp.eq.s32.totalorder %s12, 2
      %p106 = por %p104, %p105
      %p107 = scmp.ne.s32.totalorder %s99, %s102
      %p108 = scmp.eq.s32.totalorder %s12, 0
      %p109 = por %p107, %p108
      %p110 = scmp.ne.s32.totalorder %s99, %s102
      %p111 = scmp.eq.s32.totalorder %s17, 2
      %p112 = por %p110, %p111
      %p113 = scmp.ne.s32.totalorder %s102, %s103
      %p114 = scmp.eq.s32.totalorder %s17, 0
      %p115 = por %p113, %p114
      %p116 = scmp.ne.s32.totalorder %s102, %s103
      %p117 = scmp.eq.s32.totalorder %s18, 2
      %p118 = por %p116, %p117
      %p120 = scmp.ne.s32.totalorder %s103, %s119
      %p121 = scmp.eq.s32.totalorder %s18, 0
      %p122 = por %p120, %p121
      %p123 = scmp.le.s32.totalorder 1, %s12
      %p124 = scmp.lt.s32.totalorder %s12, 4
      %p125 = pnand %p123, %p124
      %p126 = pneg %p125
      // Predicated region
      $region9: #{gpt_attention_forward.4} parent=5 // pred_check
        _
      $region10: #{gpt_attention_forward.4} parent=5 // pred_check_branch
        %128 = sbr.rel (%p125) target = $region12
      $region11: #{gpt_attention_forward.4} parent=5 // pred_region
        %s129 = ssub.s32 %s12, 1
        // Predicated region
        $region13: #{gpt_attention_forward.4} parent=11 // pred_check
          %p130 = pneg %p59
        $region14: #{gpt_attention_forward.4} parent=11 // pred_check_branch
          %132 = sbr.rel (%p130) target = $region16
        $region15: #{gpt_attention_forward.4} parent=11 // pred_region
          %s133 = smul.u32 2, %s22
          %135 = vsyncadd [#allocation4], 0
          %s136 = sadd.s32 %s24, %s133
          %s137 = smul.addr %s136, 8
          %s138 = scalar_lea.hbm %s0, %s137
          %s139 = sshll.u32 %s138, 4
          %s140 = int_to_ptr.hbm [resolvable:$true] %s139
          %s141 = sshll.u32 [#allocation3], 4
          %s142 = int_to_ptr.vmem [resolvable:$true] %s141
          %147 = dma.hbm_to_vmem [thread:$0]  %s140, 256, %s142, [#allocation4], 128, 128, 8
        $region16: #{gpt_attention_forward.4} parent=11 // pred_fallthru
          _
      $region12: #{gpt_attention_forward.4} parent=5 // pred_fallthru
        _
      %p148 = scmp.lt.s32.totalorder %s12, 3
      // Predicated region
      $region17: #{gpt_attention_forward.4} parent=5 // pred_check
        %p149 = pneg %p148
      $region18: #{gpt_attention_forward.4} parent=5 // pred_check_branch
        %151 = sbr.rel (%p149) target = $region20
      $region19: #{gpt_attention_forward.4} parent=5 // pred_region
        // Predicated region
        $region21: #{gpt_attention_forward.4} parent=19 // pred_check
          %p152 = pneg %p81
        $region22: #{gpt_attention_forward.4} parent=19 // pred_check_branch
          %154 = sbr.rel (%p152) target = $region24
        $region23: #{gpt_attention_forward.4} parent=19 // pred_region
          %s155 = sand.u32 %s71, 1
          %s156 = scalar_lea.sflag [#allocation6], %s155
          %s157 = sand.u32 %s71, 1
          %s158 = smul.addr %s157, 128
          %s159 = scalar_lea.vmem [#allocation5], %s158
          %s160 = smul.u32 16, %s21
          %162 = vsyncadd %s156, 0
          %s163 = smul.addr %s160, 3
          %s164 = sadd.s32 %s20, %s163
          %s165 = smul.addr %s164, 8
          %s166 = scalar_lea.hbm %s1, %s165
          %s167 = sshll.u32 %s166, 4
          %s168 = int_to_ptr.hbm [resolvable:$true] %s167
          %s169 = sshll.u32 %s159, 4
          %s170 = int_to_ptr.vmem [resolvable:$true] %s169
          %175 = dma.hbm_to_vmem [thread:$0]  %s168, 2048, %s170, %s156, 384, 128, 8
        $region24: #{gpt_attention_forward.4} parent=19 // pred_fallthru
          _
      $region20: #{gpt_attention_forward.4} parent=5 // pred_fallthru
        _
      %p176 = scmp.le.s32.totalorder 1, %s12
      %p177 = scmp.lt.s32.totalorder %s12, 4
      %p178 = pnand %p176, %p177
      %p179 = pneg %p178
      // Predicated region
      $region25: #{gpt_attention_forward.4} parent=5 // pred_check
        _
      $region26: #{gpt_attention_forward.4} parent=5 // pred_check_branch
        %181 = sbr.rel (%p178) target = $region28
      $region27: #{gpt_attention_forward.4} parent=5 // pred_region
        %s182 = ssub.s32 %s12, 1
        // Predicated region
        $region29: #{gpt_attention_forward.4} parent=27 // pred_check
          %p183 = pneg %p59
        $region30: #{gpt_attention_forward.4} parent=27 // pred_check_branch
          %185 = sbr.rel (%p183) target = $region32
        $region31: #{gpt_attention_forward.4} parent=27 // pred_region
          %187 = dma.done [#allocation4], 256
        $region32: #{gpt_attention_forward.4} parent=27 // pred_fallthru
          _
        %s188 = sand.u32 %s74, 1
        %s189 = scalar_lea.sflag [#allocation6], %s188
        %s190 = sand.u32 %s74, 1
        %s191 = smul.addr %s190, 128
        %s192 = scalar_lea.vmem [#allocation5], %s191
        // Predicated region
        $region33: #{gpt_attention_forward.4} parent=27 // pred_check
          %p193 = pneg %p87
        $region34: #{gpt_attention_forward.4} parent=27 // pred_check_branch
          %195 = sbr.rel (%p193) target = $region36
        $region35: #{gpt_attention_forward.4} parent=27 // pred_region
          %197 = dma.done %s189, 2048
        $region36: #{gpt_attention_forward.4} parent=27 // pred_fallthru
          _
        %p198 = pneg %p59
        %p199 = pneg %p56
        %s200 = sand.u32 %s74, 1
        %s201 = scalar_lea.sflag [#allocation6], %s200
        %s202 = sand.u32 %s74, 1
        %s203 = smul.addr %s202, 128
        %s204 = scalar_lea.vmem [#allocation5], %s203
        %p205 = pneg %p87
        %p206 = pneg %p84
        %p207 = pneg %p115
        %p208 = pneg %p112
        %s209 = sand.u32 %s102, 1
        %s210 = sand.u32 %s102, 1
        %s211 = smul.addr %s210, 16
        %s212 = scalar_lea.vmem [#allocation7], %s211
        %s213 = smul.u32 2, %s22
        %s214 = smul.u32 16, %s24
        %s215 = smul.u32 2, %s22
        %p216 = scmp.eq.s32.totalorder %s24, 0
        // Predicated region
        $region37: #{gpt_attention_forward.4} parent=27 // pred_check
          %p217 = pneg %p216
        $region38: #{gpt_attention_forward.4} parent=27 // pred_check_branch
          %219 = sbr.rel (%p217) target = $region40
        $region39: #{gpt_attention_forward.4} parent=27 // pred_region
          %220 = vst [vmem:[#allocation2] sm:$0xff] 0.0
          %221 = vst [vmem:[#allocation2 + $0x8] sm:$0xff] 0.0
        $region40: #{gpt_attention_forward.4} parent=27 // pred_fallthru
          _
        %v222 = vld [vmem:[#allocation2] sm:$0xff]
        %v223 = vld [vmem:[#allocation2 + $0x8] sm:$0xff]
        %v224 = vld [vmem:[#allocation3] sm:$0xff]
        %v225 = vld [vmem:[#allocation3 + $0x8] sm:$0xff]
        %v226 = vld [vmem:[%s192] sm:$0xff]
        %v227 = vld [vmem:[%s192 + $0x8] sm:$0xff]
        %v228 = vld [vmem:[%s192 + $0x10] sm:$0xff]
        %v229 = vld [vmem:[%s192 + $0x18] sm:$0xff]
        %v230 = vld [vmem:[%s192 + $0x20] sm:$0xff]
        %v231 = vld [vmem:[%s192 + $0x28] sm:$0xff]
        %v232 = vld [vmem:[%s192 + $0x30] sm:$0xff]
        %v233 = vld [vmem:[%s192 + $0x38] sm:$0xff]
        %v234 = vld [vmem:[%s192 + $0x40] sm:$0xff]
        %v235 = vld [vmem:[%s192 + $0x48] sm:$0xff]
        %v236 = vld [vmem:[%s192 + $0x50] sm:$0xff]
        %v237 = vld [vmem:[%s192 + $0x58] sm:$0xff]
        %v238 = vld [vmem:[%s192 + $0x60] sm:$0xff]
        %v239 = vld [vmem:[%s192 + $0x68] sm:$0xff]
        %v240 = vld [vmem:[%s192 + $0x70] sm:$0xff]
        %v241 = vld [vmem:[%s192 + $0x78] sm:$0xff]
        %242 = vmatpush.msra.mxu0 %v241
        %243 = vmatpush.msra.mxu0 %v240
        %244 = vmatpush.msra.mxu0 %v239
        %245 = vmatpush.msra.mxu0 %v238
        %246 = vmatpush.msra.mxu0 %v237
        %247 = vmatpush.msra.mxu0 %v236
        %248 = vmatpush.msra.mxu0 %v235
        %249 = vmatpush.msra.mxu0 %v234
        %250 = vmatpush.msra.mxu0 %v233
        %251 = vmatpush.msra.mxu0 %v232
        %252 = vmatpush.msra.mxu0 %v231
        %253 = vmatpush.msra.mxu0 %v230
        %254 = vmatpush.msra.mxu0 %v229
        %255 = vmatpush.msra.mxu0 %v228
        %256 = vmatpush.msra.mxu0 %v227
        %257 = vmatpush.msra.mxu0 %v226
        %258 = vmatmul.f32.gmra.mxu0 %v224
        %v259 = vpop.f32.mrf.mxu0
        %v260 = vadd.f32 0.0, %v259
        %261 = vmatmul.f32.gmra.mxu0 %v225
        %v262 = vpop.f32.mrf.mxu0
        %v263 = vadd.f32 0.0, %v262
        %264 = vdwg.mxu0
        %v265 = vadd.f32 %v222, %v260
        %v266 = vadd.f32 %v223, %v263
        %267 = vst [vmem:[#allocation2] sm:$0xff] %v265
        %268 = vst [vmem:[#allocation2 + $0x8] sm:$0xff] %v266
        // Predicated region
        $region41: #{gpt_attention_forward.4} parent=27 // pred_check
          %p269 = pneg %p216
        $region42: #{gpt_attention_forward.4} parent=27 // pred_check_branch
          %271 = sbr.rel (%p269) target = $region44
        $region43: #{gpt_attention_forward.4} parent=27 // pred_region
          %v272 = vld [vmem:[#allocation2] sm:$0xff]
          %v273 = vld [vmem:[#allocation2 + $0x8] sm:$0xff]
          %274 = vst [vmem:[%s212] sm:$0xff] %v272
          %275 = vst [vmem:[%s212 + $0x8] sm:$0xff] %v273
        $region44: #{gpt_attention_forward.4} parent=27 // pred_fallthru
          _
        %s276 = sand.u32 %s102, 1
        %s277 = sand.u32 %s102, 1
        %s278 = smul.addr %s277, 16
        %s279 = scalar_lea.vmem [#allocation7], %s278
        // Predicated region
        $region45: #{gpt_attention_forward.4} parent=27 // pred_check
          %p280 = pneg %p112
        $region46: #{gpt_attention_forward.4} parent=27 // pred_check_branch
          %282 = sbr.rel (%p280) target = $region48
        $region47: #{gpt_attention_forward.4} parent=27 // pred_region
          %s283 = smul.u32 2, %s22
          %s284 = smul.addr %s283, 3
          %s285 = sadd.s32 %s23, %s284
          %s286 = smul.addr %s285, 8
          %s287 = scalar_lea.vmem %s2, %s286
          // Predicated region
          $region49: #{gpt_attention_forward.4} parent=47 // pred_check
            _
          $region50: #{gpt_attention_forward.4} parent=47 // pred_check_branch
            %289 = sbr.rel (0) target = $region52
          $region51: #{gpt_attention_forward.4} parent=47 // pred_region
            // Predicated region
            $region53: #{gpt_attention_forward.4} parent=51 // pred_check
              _
            $region54: #{gpt_attention_forward.4} parent=51 // pred_check_branch
              %291 = sbr.rel (0) target = $region56
            $region55: #{gpt_attention_forward.4} parent=51 // pred_region
              // Predicated region
              $region68: #{gpt_attention_forward.4} parent=55 // pred_check
                _
              $region69: #{gpt_attention_forward.4} parent=55 // pred_check_branch
                %309 = sbr.rel (0) target = $region71
              $region70: #{gpt_attention_forward.4} parent=55 // pred_region
                loop: start=0, step=1, limit=1
                $region72: #{gpt_attention_forward.4} parent=70 // loop_pre_header
                  _
                $region73: #{gpt_attention_forward.4} parent=70 // loop_header
                  %s311 = sphi 0, %s315
                  %p312 = scmp.ge.s32.totalorder %s311, 1
                  %s316 = sphi %s279, %s279
                  %s317 = sphi %s287, %s287
                $region74: #{gpt_attention_forward.4} parent=70 // loop_header_branch
                  %314 = sbr.rel (%p312) target = $region78
                $region75: #{gpt_attention_forward.4} parent=70 // loop_body
                  %v318 = vld [vmem:[%s316] sm:$0xff]
                  %319 = vst [vmem:[%s317] sm:$0xff] %v318
                  %v320 = vld [vmem:[%s316 + $0x8] sm:$0xff]
                  %321 = vst [vmem:[%s317 + $0x18] sm:$0xff] %v320
                $region76: #{gpt_attention_forward.4} parent=70 // loop_footer
                  %s315 = sadd.s32 1, %s311
                $region77: #{gpt_attention_forward.4} parent=70 // loop_footer_branch
                  %310 = sbr.rel target = $region73
                $region78: #{gpt_attention_forward.4} parent=70 // loop_exit
                  _
              $region71: #{gpt_attention_forward.4} parent=55 // pred_fallthru
                _
              // Predicated region
              $region79: #{gpt_attention_forward.4} parent=55 // pred_check
                _
              $region80: #{gpt_attention_forward.4} parent=55 // pred_check_branch
                %323 = sbr.rel target = $region82
              $region81: #{gpt_attention_forward.4} parent=55 // pred_region
                _
              $region82: #{gpt_attention_forward.4} parent=55 // pred_fallthru
                _
            $region56: #{gpt_attention_forward.4} parent=51 // pred_fallthru
              _
            // Predicated region
            $region57: #{gpt_attention_forward.4} parent=51 // pred_check
              _
            $region58: #{gpt_attention_forward.4} parent=51 // pred_check_branch
              %293 = sbr.rel target = $region60
            $region59: #{gpt_attention_forward.4} parent=51 // pred_region
              %s295 = ssub.s32 256, 1
              loop: start=0, step=1, limit=1
              $region61: #{gpt_attention_forward.4} parent=59 // loop_pre_header
                _
              $region62: #{gpt_attention_forward.4} parent=59 // loop_header
                %s297 = sphi 0, %s301
                %p298 = scmp.ge.s32.totalorder %s297, 1
                %s302 = sphi %s279, %s279
                %s303 = sphi %s287, %s287
              $region63: #{gpt_attention_forward.4} parent=59 // loop_header_branch
                %300 = sbr.rel (%p298) target = $region67
              $region64: #{gpt_attention_forward.4} parent=59 // loop_body
                %v304 = vld [vmem:[%s302] sm:%s295]
                %305 = vst [vmem:[%s303] sm:%s295] %v304
                %v306 = vld [vmem:[%s302 + $0x8] sm:%s295]
                %307 = vst [vmem:[%s303 + $0x18] sm:%s295] %v306
              $region65: #{gpt_attention_forward.4} parent=59 // loop_footer
                %s301 = sadd.s32 1, %s297
              $region66: #{gpt_attention_forward.4} parent=59 // loop_footer_branch
                %296 = sbr.rel target = $region62
              $region67: #{gpt_attention_forward.4} parent=59 // loop_exit
                _
            $region60: #{gpt_attention_forward.4} parent=51 // pred_fallthru
              _
          $region52: #{gpt_attention_forward.4} parent=47 // pred_fallthru
            _
          %324 = vnop
        $region48: #{gpt_attention_forward.4} parent=27 // pred_fallthru
          _
      $region28: #{gpt_attention_forward.4} parent=5 // pred_fallthru
        _
      %p325 = scmp.le.s32.totalorder 2, %s12
      // Predicated region
      $region83: #{gpt_attention_forward.4} parent=5 // pred_check
        %p326 = pneg %p325
      $region84: #{gpt_attention_forward.4} parent=5 // pred_check_branch
        %328 = sbr.rel (%p326) target = $region86
      $region85: #{gpt_attention_forward.4} parent=5 // pred_region
        %s329 = ssub.s32 %s12, 2
        // Predicated region
        $region87: #{gpt_attention_forward.4} parent=85 // pred_check
          %p330 = pneg %p118
        $region88: #{gpt_attention_forward.4} parent=85 // pred_check_branch
          %332 = sbr.rel (%p330) target = $region90
        $region89: #{gpt_attention_forward.4} parent=85 // pred_region
          %s333 = sand.u32 %s103, 1
          %s334 = sand.u32 %s103, 1
          %s335 = smul.addr %s334, 16
          %s336 = scalar_lea.vmem [#allocation7], %s335
        $region90: #{gpt_attention_forward.4} parent=85 // pred_fallthru
          _
      $region86: #{gpt_attention_forward.4} parent=5 // pred_fallthru
        _
    $region6: #{gpt_attention_forward.4} parent=1 // loop_footer
      %s16 = sadd.s32 1, %s12
    $region7: #{gpt_attention_forward.4} parent=1 // loop_footer_branch
      %11 = sbr.rel target = $region3
    $region8: #{gpt_attention_forward.4} parent=1 // loop_exit
      _
    %337 = vsyncpa [#allocation4], 1
    %s338 = scalar_lea.sflag [#allocation4], 1
    %339 = vsyncpa %s338, 1
    %340 = vsyncpa [#allocation6], 1
    %s341 = scalar_lea.sflag [#allocation6], 1
    %342 = vsyncpa %s341, 1

// kernel: gpt_attention_forward.7
$region0: #{gpt_attention_forward.7}
  #allocation0 [shape = 'u32[]', space=smem, size = 0x4, offset = 0x4, fixed_abs, tag = 'smem constant byte address 0x4 - core index']
  #allocation1 [shape = 'u32[72,128]{1,0:T(1,128)}', space=vmem, size = 0x9000, scoped, tag = 'internal scratch']
  %s0 = inlined_call_operand.vmem [shape: f32[2,8,384], index: 0, kind: input, shape index: {}, may-alias: {0,1}]
  %s1 = inlined_call_operand.vmem [shape: f32[2,8,384], index: 1, kind: input, shape index: {}, may-alias: {0,1}]
  %s2 = inlined_call_operand.hbm [shape: f32[2,4,8,8], index: 2, kind: output, shape index: {}]
  %s3 = sld [smem:[#allocation0]]
  $region41: #{gpt_attention_forward.7} parent=0
    _
  %s5 = ssub.s32 1, %s3
  %s6 = scalar_select 0, %s5, %s3
  $region1: #{gpt_attention_forward.7} parent=0
    #allocation2 [shape = 'u8[32768]{0}', space=vmem, size = 0x8000, scoped, tag = 'output window, operand 0']
    #allocation3 [shape = 's32[2]{0}', space=sflag, size = 0x8, scoped, tag = 'scoped memory for gpt_attention_forward.7']
    %7 = vsyncpa [#allocation3], 0
    %s8 = scalar_lea.sflag [#allocation3], 1
    %9 = vsyncpa %s8, 0
    loop: start=0, step=1, limit=4
    $region2: #{gpt_attention_forward.7} parent=1 // loop_pre_header
      _
    $region3: #{gpt_attention_forward.7} parent=1 // loop_header
      %s11 = sphi 0, %s15
      %p12 = scmp.ge.s32.totalorder %s11, 4
      %s18 = sphi 0, %s30
      %s19 = sphi 0, %s26
      %s20 = sphi 0, %s18
      %s21 = sphi 0, %s19
      %s22 = sphi 0, %s20
      %s23 = sphi 0, %s21
      %s35 = sphi 0, %s37
      %s38 = sphi 0, %s35
      %s39 = sphi 0, %s38
      %s55 = sphi 0, %s39
      %s61 = sphi 0, %s63
      %s64 = sphi 0, %s61
      %s65 = sphi 0, %s64
      %s81 = sphi 0, %s65
      %s89 = sphi 0, %s91
      %s92 = sphi 0, %s89
      %s93 = sphi 0, %s92
      %s109 = sphi 0, %s93
    $region4: #{gpt_attention_forward.7} parent=1 // loop_header_branch
      %14 = sbr.rel (%p12) target = $region8
    $region5: #{gpt_attention_forward.7} parent=1 // loop_body
      %s16 = ssub.s32 %s11, 1
      %s17 = ssub.s32 %s11, 2
      %s24 = sadd.s32 1, %s19
      %p25 = scmp.ge.s32.totalorder %s24, 1
      %s26 = scalar_select %p25, 0, %s24
      %s27 = sadd.s32 1, %s18
      %s28 = scalar_select %p25, %s27, %s18
      %p29 = scmp.ge.s32.totalorder %s28, 2
      %s30 = scalar_select %p29, 0, %s28
      %s31 = ssub.s32 %s18, %s30
      %s32 = ssub.s32 %s19, %s26
      %s33 = sor.u32 %s31, %s32
      %p34 = scmp.eq.s32.totalorder %s33, 0
      %s36 = sadd.s32 %s35, 1
      %s37 = scalar_select %p34, %s35, %s36
      %p40 = pneg %p34
      %p41 = scmp.eq.s32.totalorder %s11, 1
      %p42 = por %p40, %p41
      %p43 = scmp.ne.s32.totalorder %s35, %s38
      %p44 = scmp.eq.s32.totalorder %s11, 0
      %p45 = por %p43, %p44
      %p46 = scmp.ne.s32.totalorder %s35, %s38
      %p47 = scmp.eq.s32.totalorder %s16, 1
      %p48 = por %p46, %p47
      %p49 = scmp.ne.s32.totalorder %s38, %s39
      %p50 = scmp.eq.s32.totalorder %s16, 0
      %p51 = por %p49, %p50
      %p52 = scmp.ne.s32.totalorder %s38, %s39
      %p53 = scmp.eq.s32.totalorder %s17, 1
      %p54 = por %p52, %p53
      %p56 = scmp.ne.s32.totalorder %s39, %s55
      %p57 = scmp.eq.s32.totalorder %s17, 0
      %p58 = por %p56, %p57
      %s59 = ssub.s32 %s18, %s30
      %p60 = scmp.eq.s32.totalorder %s59, 0
      %s62 = sadd.s32 %s61, 1
      %s63 = scalar_select %p60, %s61, %s62
      %p66 = pneg %p60
      %p67 = scmp.eq.s32.totalorder %s11, 1
      %p68 = por %p66, %p67
      %p69 = scmp.ne.s32.totalorder %s61, %s64
      %p70 = scmp.eq.s32.totalorder %s11, 0
      %p71 = por %p69, %p70
      %p72 = scmp.ne.s32.totalorder %s61, %s64
      %p73 = scmp.eq.s32.totalorder %s16, 1
      %p74 = por %p72, %p73
      %p75 = scmp.ne.s32.totalorder %s64, %s65
      %p76 = scmp.eq.s32.totalorder %s16, 0
      %p77 = por %p75, %p76
      %p78 = scmp.ne.s32.totalorder %s64, %s65
      %p79 = scmp.eq.s32.totalorder %s17, 1
      %p80 = por %p78, %p79
      %p82 = scmp.ne.s32.totalorder %s65, %s81
      %p83 = scmp.eq.s32.totalorder %s17, 0
      %p84 = por %p82, %p83
      %s85 = ssub.s32 %s18, %s30
      %s86 = ssub.s32 %s19, %s26
      %s87 = sor.u32 %s85, %s86
      %p88 = scmp.eq.s32.totalorder %s87, 0
      %s90 = sadd.s32 %s89, 1
      %s91 = scalar_select %p88, %s89, %s90
      %p94 = pneg %p88
      %p95 = scmp.eq.s32.totalorder %s11, 1
      %p96 = por %p94, %p95
      %p97 = scmp.ne.s32.totalorder %s89, %s92
      %p98 = scmp.eq.s32.totalorder %s11, 0
      %p99 = por %p97, %p98
      %p100 = scmp.ne.s32.totalorder %s89, %s92
      %p101 = scmp.eq.s32.totalorder %s16, 1
      %p102 = por %p100, %p101
      %p103 = scmp.ne.s32.totalorder %s92, %s93
      %p104 = scmp.eq.s32.totalorder %s16, 0
      %p105 = por %p103, %p104
      %p106 = scmp.ne.s32.totalorder %s92, %s93
      %p107 = scmp.eq.s32.totalorder %s17, 1
      %p108 = por %p106, %p107
      %p110 = scmp.ne.s32.totalorder %s93, %s109
      %p111 = scmp.eq.s32.totalorder %s17, 0
      %p112 = por %p110, %p111
      %p113 = scmp.le.s32.totalorder 1, %s11
      %p114 = scmp.lt.s32.totalorder %s11, 3
      %p115 = pnand %p113, %p114
      %p116 = pneg %p115
      // Predicated region
      $region9: #{gpt_attention_forward.7} parent=5 // pred_check
        _
      $region10: #{gpt_attention_forward.7} parent=5 // pred_check_branch
        %118 = sbr.rel (%p115) target = $region12
      $region11: #{gpt_attention_forward.7} parent=5 // pred_region
        %s119 = ssub.s32 %s11, 1
      $region12: #{gpt_attention_forward.7} parent=5 // pred_fallthru
        _
      %p120 = scmp.lt.s32.totalorder %s11, 2
      // Predicated region
      $region13: #{gpt_attention_forward.7} parent=5 // pred_check
        %p121 = pneg %p120
      $region14: #{gpt_attention_forward.7} parent=5 // pred_check_branch
        %123 = sbr.rel (%p121) target = $region16
      $region15: #{gpt_attention_forward.7} parent=5 // pred_region
        // Predicated region
        $region17: #{gpt_attention_forward.7} parent=15 // pred_check
          %p124 = pneg %p45
        $region18: #{gpt_attention_forward.7} parent=15 // pred_check_branch
          %126 = sbr.rel (%p124) target = $region20
        $region19: #{gpt_attention_forward.7} parent=15 // pred_region
          %p127 = scmp.lt.s32.totalorder %s18, 1
          %s128 = scalar_select %p127, %s18, 1
          %p129 = scmp.lt.s32.totalorder %s19, 0
          %s130 = scalar_select %p129, %s19, 0
          %s131 = smul.addr %s130, 3
          %s132 = smul.addr %s128, 3
          %s133 = sadd.s32 %s131, %s132
          %s134 = smul.addr %s133, 8
          %s135 = scalar_lea.vmem %s0, %s134
        $region20: #{gpt_attention_forward.7} parent=15 // pred_fallthru
          _
        // Predicated region
        $region21: #{gpt_attention_forward.7} parent=15 // pred_check
          %p136 = pneg %p71
        $region22: #{gpt_attention_forward.7} parent=15 // pred_check_branch
          %138 = sbr.rel (%p136) target = $region24
        $region23: #{gpt_attention_forward.7} parent=15 // pred_region
          %p139 = scmp.lt.s32.totalorder %s18, 1
          %s140 = scalar_select %p139, %s18, 1
          %s141 = smul.addr %s140, 3
          %s142 = sadd.s32 1, %s141
          %s143 = smul.addr %s142, 8
          %s144 = scalar_lea.vmem %s1, %s143
        $region24: #{gpt_attention_forward.7} parent=15 // pred_fallthru
          _
      $region16: #{gpt_attention_forward.7} parent=5 // pred_fallthru
        _
      %p145 = scmp.le.s32.totalorder 1, %s11
      %p146 = scmp.lt.s32.totalorder %s11, 3
      %p147 = pnand %p145, %p146
      %p148 = pneg %p147
      // Predicated region
      $region25: #{gpt_attention_forward.7} parent=5 // pred_check
        _
      $region26: #{gpt_attention_forward.7} parent=5 // pred_check_branch
        %150 = sbr.rel (%p147) target = $region28
      $region27: #{gpt_attention_forward.7} parent=5 // pred_region
        %s151 = ssub.s32 %s11, 1
        %p152 = scmp.lt.s32.totalorder %s20, 1
        %s153 = scalar_select %p152, %s20, 1
        %p154 = scmp.lt.s32.totalorder %s21, 0
        %s155 = scalar_select %p154, %s21, 0
        %s156 = smul.addr %s155, 3
        %s157 = smul.addr %s153, 3
        %s158 = sadd.s32 %s156, %s157
        %s159 = smul.addr %s158, 8
        %s160 = scalar_lea.vmem %s0, %s159
        %p161 = pneg %p51
        %p162 = pneg %p48
        %p163 = scmp.lt.s32.totalorder %s20, 1
        %s164 = scalar_select %p163, %s20, 1
        %s165 = smul.addr %s164, 3
        %s166 = sadd.s32 1, %s165
        %s167 = smul.addr %s166, 8
        %s168 = scalar_lea.vmem %s1, %s167
        %p169 = pneg %p77
        %p170 = pneg %p74
        %p171 = pneg %p105
        %p172 = pneg %p102
        %s173 = sand.u32 %s92, 1
        %s174 = scalar_lea.sflag [#allocation3], %s173
        %s175 = sand.u32 %s92, 1
        %s176 = smul.addr %s175, 32
        %s177 = scalar_lea.vmem [#allocation2], %s176
        %p178 = scmp.lt.s32.totalorder %s20, 1
        %s179 = scalar_select %p178, %s20, 1
        %p180 = scmp.lt.s32.totalorder %s21, 0
        %s181 = scalar_select %p180, %s21, 0
        %s182 = smul.addr %s181, 3
        %s183 = smul.addr %s179, 3
        %s184 = sadd.s32 %s182, %s183
        %s185 = smul.addr %s184, 8
        %s186 = scalar_lea.vmem %s0, %s185
        %p187 = scmp.lt.s32.totalorder %s20, 1
        %s188 = scalar_select %p187, %s20, 1
        %s189 = smul.addr %s188, 3
        %s190 = sadd.s32 1, %s189
        %s191 = smul.addr %s190, 8
        %s192 = scalar_lea.vmem %s1, %s191
        %v193 = vld [vmem:[%s186] sm:$0xff]
        %v194 = vmul.f32 %v193, 0.17677669
        %v195 = vld [vmem:[%s192] sm:$0xff]
        %s196 = smul.u32 %s21, 8
        %v197 = vlaneseq
        %v198 = vshrl.u32 %v197, 7
        %v199 = vstv %s196
        %v200 = vadd.s32 %v199, %v198
        %v201 = vlaneseq
        %v202 = vand.u32 %v201, 127
        %vm203 = vcmp.ge.s32.totalorder %v200, %v202
        %vm204 = vcmask 261120
        %v206 = vsel %vm204, %v194, 0
        %v209 = vsel %vm204, %v195, 0
        %211 = vmatpush.xpose.msra.mxu0 0.0
        %212 = vmatpush.xpose.msra.mxu0 0.0
        %213 = vmatpush.xpose.msra.mxu0 0.0
        %214 = vmatpush.xpose.msra.mxu0 0.0
        %215 = vmatpush.xpose.msra.mxu0 0.0
        %216 = vmatpush.xpose.msra.mxu0 0.0
        %217 = vmatpush.xpose.msra.mxu0 0.0
        %218 = vmatpush.xpose.msra.mxu0 0.0
        %219 = vmatpush.xpose.msra.mxu0 0.0
        %220 = vmatpush.xpose.msra.mxu0 0.0
        %221 = vmatpush.xpose.msra.mxu0 0.0
        %222 = vmatpush.xpose.msra.mxu0 0.0
        %223 = vmatpush.xpose.msra.mxu0 0.0
        %224 = vmatpush.xpose.msra.mxu0 0.0
        %225 = vmatpush.xpose.msra.mxu0 0.0
        %226 = vmatpush.xpose.msra.mxu0 %v209
        %227 = vmatmul.f32.gmra.mxu0 %v206
        %v228 = vpop.f32.mrf.mxu0
        %v229 = vadd.f32 0.0, %v228
        %230 = vdwg.mxu0
        %v231 = vsel %vm203, %v229, -3.4028235e+38
        %vm232 = vcmask 64512
        %v233 = vsel %vm232, %v231, -inf
        %234 = vmax.xlane.f32.xlu0 %v233
        %v235 = vpop.xlane.xlu0 %234
        %v236 = vsub.f32 %v231, %v235
        %v237 = vmul.f32 %v236, 1.442695
        %v238 = vpow.pop %v237
        %v239 = vsel %vm232, %v238, 0.0
        %240 = vadd.xlane.f32.xlu0 %v239
        %v241 = vpop.xlane.xlu0 %240
        %v242 = vrcp.pop %v241
        %v243 = vmul.f32 %v241, %v242
        %v244 = vsub.f32 1.0, %v243
        %v245 = vmul.f32 %v242, %v244
        %v246 = vadd.f32 %v242, %v245
        %vm247 = vweird.f32 %v241
        %vm248 = vweird.f32 %v242
        %vm249 = vmor %vm247, %vm248
        %v250 = vsel %vm249, %v242, %v246
        %v251 = vand.u32 2147483647, %v241
        %vm252 = vcmp.eq.f32.partialorder %v251, 8.507059e+37
        %v253 = vand.u32 %v241, 2147483648
        %v254 = vor.u32 1.1754944e-38, %v253
        %v255 = vsel %vm252, %v254, %v250
        %v256 = vmul.f32 %v238, %v255
        %257 = vst.msk [vmem:[%s177] sm:$0xff] %vm232, %v256
        %258 = vrot.lane.b32.xlu0 %v194, 96
        %v259 = vpop.permute.xlu0 %258
        %260 = vrot.lane.b32.xlu0 %v195, 96
        %v261 = vpop.permute.xlu0 %260
        %v262 = vsel %vm204, %v259, 0
        %v264 = vsel %vm204, %v261, 0
        %266 = vmatpush.xpose.msra.mxu0 0.0
        %267 = vmatpush.xpose.msra.mxu0 0.0
        %268 = vmatpush.xpose.msra.mxu0 0.0
        %269 = vmatpush.xpose.msra.mxu0 0.0
        %270 = vmatpush.xpose.msra.mxu0 0.0
        %271 = vmatpush.xpose.msra.mxu0 0.0
        %272 = vmatpush.xpose.msra.mxu0 0.0
        %273 = vmatpush.xpose.msra.mxu0 0.0
        %274 = vmatpush.xpose.msra.mxu0 0.0
        %275 = vmatpush.xpose.msra.mxu0 0.0
        %276 = vmatpush.xpose.msra.mxu0 0.0
        %277 = vmatpush.xpose.msra.mxu0 0.0
        %278 = vmatpush.xpose.msra.mxu0 0.0
        %279 = vmatpush.xpose.msra.mxu0 0.0
        %280 = vmatpush.xpose.msra.mxu0 0.0
        %281 = vmatpush.xpose.msra.mxu0 %v264
        %282 = vmatmul.f32.gmra.mxu0 %v262
        %v283 = vpop.f32.mrf.mxu0
        %v284 = vadd.f32 0.0, %v283
        %285 = vdwg.mxu0
        %v286 = vsel %vm203, %v284, -3.4028235e+38
        %v287 = vsel %vm232, %v286, -inf
        %288 = vmax.xlane.f32.xlu0 %v287
        %v289 = vpop.xlane.xlu0 %288
        %v290 = vsub.f32 %v286, %v289
        %v291 = vmul.f32 %v290, 1.442695
        %v292 = vpow.pop %v291
        %v293 = vsel %vm232, %v292, 0.0
        %294 = vadd.xlane.f32.xlu0 %v293
        %v295 = vpop.xlane.xlu0 %294
        %v296 = vrcp.pop %v295
        %v297 = vmul.f32 %v295, %v296
        %v298 = vsub.f32 1.0, %v297
        %v299 = vmul.f32 %v296, %v298
        %v300 = vadd.f32 %v296, %v299
        %vm301 = vweird.f32 %v295
        %vm302 = vweird.f32 %v296
        %vm303 = vmor %vm301, %vm302
        %v304 = vsel %vm303, %v296, %v300
        %v305 = vand.u32 2147483647, %v295
        %vm306 = vcmp.eq.f32.partialorder %v305, 8.507059e+37
        %v307 = vand.u32 %v295, 2147483648
        %v308 = vor.u32 1.1754944e-38, %v307
        %v309 = vsel %vm306, %v308, %v304
        %v310 = vmul.f32 %v292, %v309
        %s311 = scalar_lea.vmem %s177, 8 [#allocation2]
        %312 = vst.msk [vmem:[%s311] sm:$0xff] %vm232, %v310
        %313 = vrot.lane.b32.xlu0 %v194, 64
        %v314 = vpop.permute.xlu0 %313
        %315 = vrot.lane.b32.xlu0 %v195, 64
        %v316 = vpop.permute.xlu0 %315
        %v317 = vsel %vm204, %v314, 0
        %v319 = vsel %vm204, %v316, 0
        %321 = vmatpush.xpose.msra.mxu0 0.0
        %322 = vmatpush.xpose.msra.mxu0 0.0
        %323 = vmatpush.xpose.msra.mxu0 0.0
        %324 = vmatpush.xpose.msra.mxu0 0.0
        %325 = vmatpush.xpose.msra.mxu0 0.0
        %326 = vmatpush.xpose.msra.mxu0 0.0
        %327 = vmatpush.xpose.msra.mxu0 0.0
        %328 = vmatpush.xpose.msra.mxu0 0.0
        %329 = vmatpush.xpose.msra.mxu0 0.0
        %330 = vmatpush.xpose.msra.mxu0 0.0
        %331 = vmatpush.xpose.msra.mxu0 0.0
        %332 = vmatpush.xpose.msra.mxu0 0.0
        %333 = vmatpush.xpose.msra.mxu0 0.0
        %334 = vmatpush.xpose.msra.mxu0 0.0
        %335 = vmatpush.xpose.msra.mxu0 0.0
        %336 = vmatpush.xpose.msra.mxu0 %v319
        %337 = vmatmul.f32.gmra.mxu0 %v317
        %v338 = vpop.f32.mrf.mxu0
        %v339 = vadd.f32 0.0, %v338
        %340 = vdwg.mxu0
        %v341 = vsel %vm203, %v339, -3.4028235e+38
        %v342 = vsel %vm232, %v341, -inf
        %343 = vmax.xlane.f32.xlu0 %v342
        %v344 = vpop.xlane.xlu0 %343
        %v345 = vsub.f32 %v341, %v344
        %v346 = vmul.f32 %v345, 1.442695
        %v347 = vpow.pop %v346
        %v348 = vsel %vm232, %v347, 0.0
        %349 = vadd.xlane.f32.xlu0 %v348
        %v350 = vpop.xlane.xlu0 %349
        %v351 = vrcp.pop %v350
        %v352 = vmul.f32 %v350, %v351
        %v353 = vsub.f32 1.0, %v352
        %v354 = vmul.f32 %v351, %v353
        %v355 = vadd.f32 %v351, %v354
        %vm356 = vweird.f32 %v350
        %vm357 = vweird.f32 %v351
        %vm358 = vmor %vm356, %vm357
        %v359 = vsel %vm358, %v351, %v355
        %v360 = vand.u32 2147483647, %v350
        %vm361 = vcmp.eq.f32.partialorder %v360, 8.507059e+37
        %v362 = vand.u32 %v350, 2147483648
        %v363 = vor.u32 1.1754944e-38, %v362
        %v364 = vsel %vm361, %v363, %v359
        %v365 = vmul.f32 %v347, %v364
        %s366 = scalar_lea.vmem %s177, 16 [#allocation2]
        %367 = vst.msk [vmem:[%s366] sm:$0xff] %vm232, %v365
        %368 = vrot.lane.b32.xlu0 %v194, 32
        %v369 = vpop.permute.xlu0 %368
        %370 = vrot.lane.b32.xlu0 %v195, 32
        %v371 = vpop.permute.xlu0 %370
        %v372 = vsel %vm204, %v369, 0
        %v374 = vsel %vm204, %v371, 0
        %376 = vmatpush.xpose.msra.mxu0 0.0
        %377 = vmatpush.xpose.msra.mxu0 0.0
        %378 = vmatpush.xpose.msra.mxu0 0.0
        %379 = vmatpush.xpose.msra.mxu0 0.0
        %380 = vmatpush.xpose.msra.mxu0 0.0
        %381 = vmatpush.xpose.msra.mxu0 0.0
        %382 = vmatpush.xpose.msra.mxu0 0.0
        %383 = vmatpush.xpose.msra.mxu0 0.0
        %384 = vmatpush.xpose.msra.mxu0 0.0
        %385 = vmatpush.xpose.msra.mxu0 0.0
        %386 = vmatpush.xpose.msra.mxu0 0.0
        %387 = vmatpush.xpose.msra.mxu0 0.0
        %388 = vmatpush.xpose.msra.mxu0 0.0
        %389 = vmatpush.xpose.msra.mxu0 0.0
        %390 = vmatpush.xpose.msra.mxu0 0.0
        %391 = vmatpush.xpose.msra.mxu0 %v374
        %392 = vmatmul.f32.gmra.mxu0 %v372
        %v393 = vpop.f32.mrf.mxu0
        %v394 = vadd.f32 0.0, %v393
        %395 = vdwg.mxu0
        %v396 = vsel %vm203, %v394, -3.4028235e+38
        %v397 = vsel %vm232, %v396, -inf
        %398 = vmax.xlane.f32.xlu0 %v397
        %v399 = vpop.xlane.xlu0 %398
        %v400 = vsub.f32 %v396, %v399
        %v401 = vmul.f32 %v400, 1.442695
        %v402 = vpow.pop %v401
        %v403 = vsel %vm232, %v402, 0.0
        %404 = vadd.xlane.f32.xlu0 %v403
        %v405 = vpop.xlane.xlu0 %404
        %v406 = vrcp.pop %v405
        %v407 = vmul.f32 %v405, %v406
        %v408 = vsub.f32 1.0, %v407
        %v409 = vmul.f32 %v406, %v408
        %v410 = vadd.f32 %v406, %v409
        %vm411 = vweird.f32 %v405
        %vm412 = vweird.f32 %v406
        %vm413 = vmor %vm411, %vm412
        %v414 = vsel %vm413, %v406, %v410
        %v415 = vand.u32 2147483647, %v405
        %vm416 = vcmp.eq.f32.partialorder %v415, 8.507059e+37
        %v417 = vand.u32 %v405, 2147483648
        %v418 = vor.u32 1.1754944e-38, %v417
        %v419 = vsel %vm416, %v418, %v414
        %v420 = vmul.f32 %v402, %v419
        %s421 = scalar_lea.vmem %s177, 24 [#allocation2]
        %422 = vst.msk [vmem:[%s421] sm:$0xff] %vm232, %v420
        %s423 = sand.u32 %s92, 1
        %s424 = scalar_lea.sflag [#allocation3], %s423
        %s425 = sand.u32 %s92, 1
        %s426 = smul.addr %s425, 32
        %s427 = scalar_lea.vmem [#allocation2], %s426
        // Predicated region
        $region29: #{gpt_attention_forward.7} parent=27 // pred_check
          %p428 = pneg %p102
        $region30: #{gpt_attention_forward.7} parent=27 // pred_check_branch
          %430 = sbr.rel (%p428) target = $region32
        $region31: #{gpt_attention_forward.7} parent=27 // pred_region
          %432 = vsyncadd %s424, 0
          %s433 = smul.addr %s20, 4
          %s434 = sadd.s32 %s21, %s433
          %s435 = smul.addr %s434, 8
          %s436 = scalar_lea.hbm %s2, %s435
          %s437 = sshll.u32 %s427, 4
          %s438 = int_to_ptr.vmem [resolvable:$true] %s437
          %s439 = sshll.u32 %s436, 4
          %s440 = int_to_ptr.hbm [resolvable:$true] %s439
          %445 = dma.vmem_to_hbm [thread:$0]  %s438, 512, %s440, %s424, 128, 128, 8
        $region32: #{gpt_attention_forward.7} parent=27 // pred_fallthru
          _
      $region28: #{gpt_attention_forward.7} parent=5 // pred_fallthru
        _
      %p446 = scmp.le.s32.totalorder 2, %s11
      // Predicated region
      $region33: #{gpt_attention_forward.7} parent=5 // pred_check
        %p447 = pneg %p446
      $region34: #{gpt_attention_forward.7} parent=5 // pred_check_branch
        %449 = sbr.rel (%p447) target = $region36
      $region35: #{gpt_attention_forward.7} parent=5 // pred_region
        %s450 = ssub.s32 %s11, 2
        // Predicated region
        $region37: #{gpt_attention_forward.7} parent=35 // pred_check
          %p451 = pneg %p108
        $region38: #{gpt_attention_forward.7} parent=35 // pred_check_branch
          %453 = sbr.rel (%p451) target = $region40
        $region39: #{gpt_attention_forward.7} parent=35 // pred_region
          %s454 = sand.u32 %s93, 1
          %s455 = scalar_lea.sflag [#allocation3], %s454
          %s456 = sand.u32 %s93, 1
          %s457 = smul.addr %s456, 32
          %s458 = scalar_lea.vmem [#allocation2], %s457
          %460 = dma.done %s455, 512
        $region40: #{gpt_attention_forward.7} parent=35 // pred_fallthru
          _
      $region36: #{gpt_attention_forward.7} parent=5 // pred_fallthru
        _
    $region6: #{gpt_attention_forward.7} parent=1 // loop_footer
      %s15 = sadd.s32 1, %s11
    $region7: #{gpt_attention_forward.7} parent=1 // loop_footer_branch
      %10 = sbr.rel target = $region3
    $region8: #{gpt_attention_forward.7} parent=1 // loop_exit
      _
    %461 = vsyncpa [#allocation3], 1
    %s462 = scalar_lea.sflag [#allocation3], 1
    %463 = vsyncpa %s462, 1

// kernel: gpt_attention_forward.6
$region0: #{gpt_attention_forward.6}
  #allocation0 [shape = 'u32[]', space=smem, size = 0x4, offset = 0x4, fixed_abs, tag = 'smem constant byte address 0x4 - core index']
  #allocation1 [shape = 'u32[72,128]{1,0:T(1,128)}', space=vmem, size = 0x9000, scoped, tag = 'internal scratch']
  #allocation2 [shape = 'f32[16,128]{1,0:T(8,128)}', space=vmem, size = 0x2000, scoped, tag = 'scratch operand']
  %s0 = inlined_call_operand.vmem [shape: f32[16,128], index: 0, kind: input, shape index: {}]
  %s1 = inlined_call_operand.hbm [shape: f32[128,128], index: 1, kind: input, shape index: {}]
  %s2 = inlined_call_operand.vmem [shape: f32[1,128], index: 2, kind: input, shape index: {}]
  %s3 = inlined_call_operand.hbm [shape: f32[16,128], index: 3, kind: output, shape index: {}]
  %s4 = sld [smem:[#allocation0]]
  $region34: #{gpt_attention_forward.6} parent=0
    _
  %s6 = ssub.s32 1, %s4
  %s7 = scalar_select 0, %s6, %s4
  $region1: #{gpt_attention_forward.6} parent=0
    #allocation3 [shape = 'u8[65536]{0}', space=vmem, size = 0x10000, scoped, tag = 'input window, operand 1, single buffered']
    #allocation4 [shape = 's32[1]{0}', space=sflag, size = 0x4, scoped, tag = 'scoped memory for gpt_attention_forward.6']
    #allocation5 [shape = 's32[1]{0}', space=sflag, size = 0x4, scoped, tag = 'scoped memory for gpt_attention_forward.6']
    #allocation6 [shape = 'u8[8192]{0}', space=vmem, size = 0x2000, scoped, tag = 'output window, operand 0, single buffered']
    %8 = vsyncpa [#allocation4], 0
    %9 = vsyncpa [#allocation5], 0
    // Predicated region
    $region2: #{gpt_attention_forward.6} parent=1 // pred_check
      _
    $region3: #{gpt_attention_forward.6} parent=1 // pred_check_branch
      %11 = sbr.rel (0) target = $region5
    $region4: #{gpt_attention_forward.6} parent=1 // pred_region
      _
    $region5: #{gpt_attention_forward.6} parent=1 // pred_fallthru
      _
    // Predicated region
    $region6: #{gpt_attention_forward.6} parent=1 // pred_check
      _
    $region7: #{gpt_attention_forward.6} parent=1 // pred_check_branch
      %13 = sbr.rel (0) target = $region9
    $region8: #{gpt_attention_forward.6} parent=1 // pred_region
      %15 = vsyncadd [#allocation4], 0
      %s16 = sshll.u32 %s1, 4
      %s17 = int_to_ptr.hbm [resolvable:$true] %s16
      %s18 = sshll.u32 [#allocation3], 4
      %s19 = int_to_ptr.vmem [resolvable:$true] %s18
      %24 = dma.hbm_to_vmem [thread:$0]  %s17, 2048, %s19, [#allocation4], 128, 128, 8
    $region9: #{gpt_attention_forward.6} parent=1 // pred_fallthru
      _
    // Predicated region
    $region10: #{gpt_attention_forward.6} parent=1 // pred_check
      _
    $region11: #{gpt_attention_forward.6} parent=1 // pred_check_branch
      %26 = sbr.rel (0) target = $region13
    $region12: #{gpt_attention_forward.6} parent=1 // pred_region
      _
    $region13: #{gpt_attention_forward.6} parent=1 // pred_fallthru
      _
    // Predicated region
    $region14: #{gpt_attention_forward.6} parent=1 // pred_check
      _
    $region15: #{gpt_attention_forward.6} parent=1 // pred_check_branch
      %28 = sbr.rel (0) target = $region17
    $region16: #{gpt_attention_forward.6} parent=1 // pred_region
      %30 = dma.done [#allocation4], 2048
    $region17: #{gpt_attention_forward.6} parent=1 // pred_fallthru
      _
    %p31 = scmp.eq.s32.totalorder 0, 0
    // Predicated region
    $region18: #{gpt_attention_forward.6} parent=1 // pred_check
      %p32 = pneg %p31
    $region19: #{gpt_attention_forward.6} parent=1 // pred_check_branch
      %34 = sbr.rel (%p32) target = $region21
    $region20: #{gpt_attention_forward.6} parent=1 // pred_region
      %35 = vst [vmem:[#allocation2] sm:$0xff] 0.0
      %36 = vst [vmem:[#allocation2 + $0x8] sm:$0xff] 0.0
    $region21: #{gpt_attention_forward.6} parent=1 // pred_fallthru
      _
    %v37 = vld [vmem:[#allocation2] sm:$0xff]
    %v38 = vld [vmem:[#allocation2 + $0x8] sm:$0xff]
    %v39 = vld [vmem:[%s0] sm:$0xff]
    %v40 = vld [vmem:[%s0 + $0x8] sm:$0xff]
    %v41 = vld [vmem:[#allocation3] sm:$0xff]
    %v42 = vld [vmem:[#allocation3 + $0x8] sm:$0xff]
    %v43 = vld [vmem:[#allocation3 + $0x10] sm:$0xff]
    %v44 = vld [vmem:[#allocation3 + $0x18] sm:$0xff]
    %v45 = vld [vmem:[#allocation3 + $0x20] sm:$0xff]
    %v46 = vld [vmem:[#allocation3 + $0x28] sm:$0xff]
    %v47 = vld [vmem:[#allocation3 + $0x30] sm:$0xff]
    %v48 = vld [vmem:[#allocation3 + $0x38] sm:$0xff]
    %v49 = vld [vmem:[#allocation3 + $0x40] sm:$0xff]
    %v50 = vld [vmem:[#allocation3 + $0x48] sm:$0xff]
    %v51 = vld [vmem:[#allocation3 + $0x50] sm:$0xff]
    %v52 = vld [vmem:[#allocation3 + $0x58] sm:$0xff]
    %v53 = vld [vmem:[#allocation3 + $0x60] sm:$0xff]
    %v54 = vld [vmem:[#allocation3 + $0x68] sm:$0xff]
    %v55 = vld [vmem:[#allocation3 + $0x70] sm:$0xff]
    %v56 = vld [vmem:[#allocation3 + $0x78] sm:$0xff]
    %57 = vmatpush.msra.mxu0 %v56
    %58 = vmatpush.msra.mxu0 %v55
    %59 = vmatpush.msra.mxu0 %v54
    %60 = vmatpush.msra.mxu0 %v53
    %61 = vmatpush.msra.mxu0 %v52
    %62 = vmatpush.msra.mxu0 %v51
    %63 = vmatpush.msra.mxu0 %v50
    %64 = vmatpush.msra.mxu0 %v49
    %65 = vmatpush.msra.mxu0 %v48
    %66 = vmatpush.msra.mxu0 %v47
    %67 = vmatpush.msra.mxu0 %v46
    %68 = vmatpush.msra.mxu0 %v45
    %69 = vmatpush.msra.mxu0 %v44
    %70 = vmatpush.msra.mxu0 %v43
    %71 = vmatpush.msra.mxu0 %v42
    %72 = vmatpush.msra.mxu0 %v41
    %73 = vmatmul.f32.gmra.mxu0 %v39
    %v74 = vpop.f32.mrf.mxu0
    %v75 = vadd.f32 0.0, %v74
    %76 = vmatmul.f32.gmra.mxu0 %v40
    %v77 = vpop.f32.mrf.mxu0
    %v78 = vadd.f32 0.0, %v77
    %79 = vdwg.mxu0
    %v80 = vadd.f32 %v37, %v75
    %v81 = vadd.f32 %v38, %v78
    %82 = vst [vmem:[#allocation2] sm:$0xff] %v80
    %83 = vst [vmem:[#allocation2 + $0x8] sm:$0xff] %v81
    // Predicated region
    $region22: #{gpt_attention_forward.6} parent=1 // pred_check
      %p84 = pneg %p31
    $region23: #{gpt_attention_forward.6} parent=1 // pred_check_branch
      %86 = sbr.rel (%p84) target = $region25
    $region24: #{gpt_attention_forward.6} parent=1 // pred_region
      %v87 = vld [vmem:[#allocation2] sm:$0xff]
      %v88 = vld [vmem:[#allocation2 + $0x8] sm:$0xff]
      %v89 = vld [vmem:[%s2] sm:$0x1]
      %v91 = vperm.slane %v89, 0
      %v93 = vadd.f32 %v87, %v91
      %v94 = vadd.f32 %v88, %v91
      %95 = vst [vmem:[#allocation6] sm:$0xff] %v93
      %96 = vst [vmem:[#allocation6 + $0x8] sm:$0xff] %v94
    $region25: #{gpt_attention_forward.6} parent=1 // pred_fallthru
      _
    // Predicated region
    $region26: #{gpt_attention_forward.6} parent=1 // pred_check
      _
    $region27: #{gpt_attention_forward.6} parent=1 // pred_check_branch
      %98 = sbr.rel (0) target = $region29
    $region28: #{gpt_attention_forward.6} parent=1 // pred_region
      %100 = vsyncadd [#allocation5], 0
      %s101 = sshll.u32 [#allocation6], 4
      %s102 = int_to_ptr.vmem [resolvable:$true] %s101
      %s103 = sshll.u32 %s3, 4
      %s104 = int_to_ptr.hbm [resolvable:$true] %s103
      %109 = dma.vmem_to_hbm [thread:$0]  %s102, 256, %s104, [#allocation5], 128, 128, 8
    $region29: #{gpt_attention_forward.6} parent=1 // pred_fallthru
      _
    // Predicated region
    $region30: #{gpt_attention_forward.6} parent=1 // pred_check
      _
    $region31: #{gpt_attention_forward.6} parent=1 // pred_check_branch
      %111 = sbr.rel (0) target = $region33
    $region32: #{gpt_attention_forward.6} parent=1 // pred_region
      %113 = dma.done [#allocation5], 256
    $region33: #{gpt_attention_forward.6} parent=1 // pred_fallthru
      _
    %114 = vsyncpa [#allocation4], 1
    %115 = vsyncpa [#allocation5], 1

// kernel: gpt_attention_forward.5
$region0: #{gpt_attention_forward.5}
  #allocation0 [shape = 'u32[]', space=smem, size = 0x4, offset = 0x4, fixed_abs, tag = 'smem constant byte address 0x4 - core index']
  #allocation1 [shape = 'u32[72,128]{1,0:T(1,128)}', space=vmem, size = 0x9000, scoped, tag = 'internal scratch']
  #allocation2 [shape = 'f32[4,8,1]{2,1,0:T(8,128)}', space=vmem, size = 0x4000, scoped, tag = 'scratch operand']
  #allocation3 [shape = 'f32[4,8,1]{2,1,0:T(8,128)}', space=vmem, size = 0x4000, scoped, tag = 'scratch operand']
  #allocation4 [shape = 'f32[4,8,32]{2,1,0:T(8,128)}', space=vmem, size = 0x4000, scoped, tag = 'scratch operand']
  %s0 = inlined_call_operand.vmem [shape: f32[2,8,384], index: 0, kind: input, shape index: {}, may-alias: {0,1,2}]
  %s1 = inlined_call_operand.vmem [shape: f32[2,8,384], index: 1, kind: input, shape index: {}, may-alias: {0,1,2}]
  %s2 = inlined_call_operand.vmem [shape: f32[2,8,384], index: 2, kind: input, shape index: {}, may-alias: {0,1,2}]
  %s3 = inlined_call_operand.vmem [shape: f32[2,8,128], index: 3, kind: output, shape index: {}]
  %s4 = sld [smem:[#allocation0]]
  $region57: #{gpt_attention_forward.5} parent=0
    _
  %s6 = ssub.s32 1, %s4
  %s7 = scalar_select 0, %s6, %s4
  loop: start=0, step=1, limit=4
  $region2: #{gpt_attention_forward.5} parent=0 // loop_pre_header
    _
  $region3: #{gpt_attention_forward.5} parent=0 // loop_header
    %s9 = sphi 0, %s13
    %p10 = scmp.ge.s32.totalorder %s9, 4
    %s16 = sphi 0, %s35
    %s17 = sphi 0, %s31
    %s18 = sphi 0, %s27
    %s19 = sphi 0, %s16
    %s20 = sphi 0, %s17
    %s21 = sphi 0, %s18
    %s22 = sphi 0, %s19
    %s23 = sphi 0, %s20
    %s24 = sphi 0, %s21
    %s40 = sphi 0, %s42
    %s43 = sphi 0, %s40
    %s44 = sphi 0, %s43
    %s60 = sphi 0, %s44
    %s68 = sphi 0, %s70
    %s71 = sphi 0, %s68
    %s72 = sphi 0, %s71
    %s88 = sphi 0, %s72
    %s96 = sphi 0, %s98
    %s99 = sphi 0, %s96
    %s100 = sphi 0, %s99
    %s116 = sphi 0, %s100
    %s124 = sphi 0, %s126
    %s127 = sphi 0, %s124
    %s128 = sphi 0, %s127
    %s144 = sphi 0, %s128
  $region4: #{gpt_attention_forward.5} parent=0 // loop_header_branch
    %12 = sbr.rel (%p10) target = $region8
  $region5: #{gpt_attention_forward.5} parent=0 // loop_body
    %s14 = ssub.s32 %s9, 1
    %s15 = ssub.s32 %s9, 2
    %s25 = sadd.s32 1, %s18
    %p26 = scmp.ge.s32.totalorder %s25, 1
    %s27 = scalar_select %p26, 0, %s25
    %s28 = sadd.s32 1, %s17
    %s29 = scalar_select %p26, %s28, %s17
    %p30 = scmp.ge.s32.totalorder %s29, 1
    %s31 = scalar_select %p30, 0, %s29
    %s32 = sadd.s32 1, %s16
    %s33 = scalar_select %p30, %s32, %s16
    %p34 = scmp.ge.s32.totalorder %s33, 2
    %s35 = scalar_select %p34, 0, %s33
    %s36 = ssub.s32 %s16, %s35
    %s37 = ssub.s32 %s17, %s31
    %s38 = sor.u32 %s36, %s37
    %p39 = scmp.eq.s32.totalorder %s38, 0
    %s41 = sadd.s32 %s40, 1
    %s42 = scalar_select %p39, %s40, %s41
    %p45 = pneg %p39
    %p46 = scmp.eq.s32.totalorder %s9, 1
    %p47 = por %p45, %p46
    %p48 = scmp.ne.s32.totalorder %s40, %s43
    %p49 = scmp.eq.s32.totalorder %s9, 0
    %p50 = por %p48, %p49
    %p51 = scmp.ne.s32.totalorder %s40, %s43
    %p52 = scmp.eq.s32.totalorder %s14, 1
    %p53 = por %p51, %p52
    %p54 = scmp.ne.s32.totalorder %s43, %s44
    %p55 = scmp.eq.s32.totalorder %s14, 0
    %p56 = por %p54, %p55
    %p57 = scmp.ne.s32.totalorder %s43, %s44
    %p58 = scmp.eq.s32.totalorder %s15, 1
    %p59 = por %p57, %p58
    %p61 = scmp.ne.s32.totalorder %s44, %s60
    %p62 = scmp.eq.s32.totalorder %s15, 0
    %p63 = por %p61, %p62
    %s64 = ssub.s32 %s16, %s35
    %s65 = ssub.s32 %s18, %s27
    %s66 = sor.u32 %s64, %s65
    %p67 = scmp.eq.s32.totalorder %s66, 0
    %s69 = sadd.s32 %s68, 1
    %s70 = scalar_select %p67, %s68, %s69
    %p73 = pneg %p67
    %p74 = scmp.eq.s32.totalorder %s9, 1
    %p75 = por %p73, %p74
    %p76 = scmp.ne.s32.totalorder %s68, %s71
    %p77 = scmp.eq.s32.totalorder %s9, 0
    %p78 = por %p76, %p77
    %p79 = scmp.ne.s32.totalorder %s68, %s71
    %p80 = scmp.eq.s32.totalorder %s14, 1
    %p81 = por %p79, %p80
    %p82 = scmp.ne.s32.totalorder %s71, %s72
    %p83 = scmp.eq.s32.totalorder %s14, 0
    %p84 = por %p82, %p83
    %p85 = scmp.ne.s32.totalorder %s71, %s72
    %p86 = scmp.eq.s32.totalorder %s15, 1
    %p87 = por %p85, %p86
    %p89 = scmp.ne.s32.totalorder %s72, %s88
    %p90 = scmp.eq.s32.totalorder %s15, 0
    %p91 = por %p89, %p90
    %s92 = ssub.s32 %s16, %s35
    %s93 = ssub.s32 %s18, %s27
    %s94 = sor.u32 %s92, %s93
    %p95 = scmp.eq.s32.totalorder %s94, 0
    %s97 = sadd.s32 %s96, 1
    %s98 = scalar_select %p95, %s96, %s97
    %p101 = pneg %p95
    %p102 = scmp.eq.s32.totalorder %s9, 1
    %p103 = por %p101, %p102
    %p104 = scmp.ne.s32.totalorder %s96, %s99
    %p105 = scmp.eq.s32.totalorder %s9, 0
    %p106 = por %p104, %p105
    %p107 = scmp.ne.s32.totalorder %s96, %s99
    %p108 = scmp.eq.s32.totalorder %s14, 1
    %p109 = por %p107, %p108
    %p110 = scmp.ne.s32.totalorder %s99, %s100
    %p111 = scmp.eq.s32.totalorder %s14, 0
    %p112 = por %p110, %p111
    %p113 = scmp.ne.s32.totalorder %s99, %s100
    %p114 = scmp.eq.s32.totalorder %s15, 1
    %p115 = por %p113, %p114
    %p117 = scmp.ne.s32.totalorder %s100, %s116
    %p118 = scmp.eq.s32.totalorder %s15, 0
    %p119 = por %p117, %p118
    %s120 = ssub.s32 %s16, %s35
    %s121 = ssub.s32 %s17, %s31
    %s122 = sor.u32 %s120, %s121
    %p123 = scmp.eq.s32.totalorder %s122, 0
    %s125 = sadd.s32 %s124, 1
    %s126 = scalar_select %p123, %s124, %s125
    %p129 = pneg %p123
    %p130 = scmp.eq.s32.totalorder %s9, 1
    %p131 = por %p129, %p130
    %p132 = scmp.ne.s32.totalorder %s124, %s127
    %p133 = scmp.eq.s32.totalorder %s9, 0
    %p134 = por %p132, %p133
    %p135 = scmp.ne.s32.totalorder %s124, %s127
    %p136 = scmp.eq.s32.totalorder %s14, 1
    %p137 = por %p135, %p136
    %p138 = scmp.ne.s32.totalorder %s127, %s128
    %p139 = scmp.eq.s32.totalorder %s14, 0
    %p140 = por %p138, %p139
    %p141 = scmp.ne.s32.totalorder %s127, %s128
    %p142 = scmp.eq.s32.totalorder %s15, 1
    %p143 = por %p141, %p142
    %p145 = scmp.ne.s32.totalorder %s128, %s144
    %p146 = scmp.eq.s32.totalorder %s15, 0
    %p147 = por %p145, %p146
    %p148 = scmp.le.s32.totalorder 1, %s9
    %p149 = scmp.lt.s32.totalorder %s9, 3
    %p150 = pnand %p148, %p149
    %p151 = pneg %p150
    // Predicated region
    $region9: #{gpt_attention_forward.5} parent=5 // pred_check
      _
    $region10: #{gpt_attention_forward.5} parent=5 // pred_check_branch
      %153 = sbr.rel (%p150) target = $region12
    $region11: #{gpt_attention_forward.5} parent=5 // pred_region
      %s154 = ssub.s32 %s9, 1
    $region12: #{gpt_attention_forward.5} parent=5 // pred_fallthru
      _
    %p155 = scmp.lt.s32.totalorder %s9, 2
    // Predicated region
    $region13: #{gpt_attention_forward.5} parent=5 // pred_check
      %p156 = pneg %p155
    $region14: #{gpt_attention_forward.5} parent=5 // pred_check_branch
      %158 = sbr.rel (%p156) target = $region16
    $region15: #{gpt_attention_forward.5} parent=5 // pred_region
      // Predicated region
      $region17: #{gpt_attention_forward.5} parent=15 // pred_check
        %p159 = pneg %p50
      $region18: #{gpt_attention_forward.5} parent=15 // pred_check_branch
        %161 = sbr.rel (%p159) target = $region20
      $region19: #{gpt_attention_forward.5} parent=15 // pred_region
        %p162 = scmp.lt.s32.totalorder %s16, 1
        %s163 = scalar_select %p162, %s16, 1
        %p164 = scmp.lt.s32.totalorder %s17, 0
        %s165 = scalar_select %p164, %s17, 0
        %s166 = smul.addr %s165, 3
        %s167 = smul.addr %s163, 3
        %s168 = sadd.s32 %s166, %s167
        %s169 = smul.addr %s168, 8
        %s170 = scalar_lea.vmem %s0, %s169
      $region20: #{gpt_attention_forward.5} parent=15 // pred_fallthru
        _
      // Predicated region
      $region21: #{gpt_attention_forward.5} parent=15 // pred_check
        %p171 = pneg %p78
      $region22: #{gpt_attention_forward.5} parent=15 // pred_check_branch
        %173 = sbr.rel (%p171) target = $region24
      $region23: #{gpt_attention_forward.5} parent=15 // pred_region
        %p174 = scmp.lt.s32.totalorder %s16, 1
        %s175 = scalar_select %p174, %s16, 1
        %p176 = scmp.lt.s32.totalorder %s18, 0
        %s177 = scalar_select %p176, %s18, 0
        %s178 = smul.addr %s177, 3
        %s179 = sadd.s32 1, %s178
        %s180 = smul.addr %s175, 3
        %s181 = sadd.s32 %s179, %s180
        %s182 = smul.addr %s181, 8
        %s183 = scalar_lea.vmem %s1, %s182
      $region24: #{gpt_attention_forward.5} parent=15 // pred_fallthru
        _
      // Predicated region
      $region25: #{gpt_attention_forward.5} parent=15 // pred_check
        %p184 = pneg %p106
      $region26: #{gpt_attention_forward.5} parent=15 // pred_check_branch
        %186 = sbr.rel (%p184) target = $region28
      $region27: #{gpt_attention_forward.5} parent=15 // pred_region
        %p187 = scmp.lt.s32.totalorder %s16, 1
        %s188 = scalar_select %p187, %s16, 1
        %p189 = scmp.lt.s32.totalorder %s18, 0
        %s190 = scalar_select %p189, %s18, 0
        %s191 = smul.addr %s190, 3
        %s192 = sadd.s32 2, %s191
        %s193 = smul.addr %s188, 3
        %s194 = sadd.s32 %s192, %s193
        %s195 = smul.addr %s194, 8
        %s196 = scalar_lea.vmem %s2, %s195
      $region28: #{gpt_attention_forward.5} parent=15 // pred_fallthru
        _
    $region16: #{gpt_attention_forward.5} parent=5 // pred_fallthru
      _
    %p197 = scmp.le.s32.totalorder 1, %s9
    %p198 = scmp.lt.s32.totalorder %s9, 3
    %p199 = pnand %p197, %p198
    %p200 = pneg %p199
    // Predicated region
    $region29: #{gpt_attention_forward.5} parent=5 // pred_check
      _
    $region30: #{gpt_attention_forward.5} parent=5 // pred_check_branch
      %202 = sbr.rel (%p199) target = $region32
    $region31: #{gpt_attention_forward.5} parent=5 // pred_region
      %s203 = ssub.s32 %s9, 1
      %p204 = scmp.lt.s32.totalorder %s19, 1
      %s205 = scalar_select %p204, %s19, 1
      %p206 = scmp.lt.s32.totalorder %s20, 0
      %s207 = scalar_select %p206, %s20, 0
      %s208 = smul.addr %s207, 3
      %s209 = smul.addr %s205, 3
      %s210 = sadd.s32 %s208, %s209
      %s211 = smul.addr %s210, 8
      %s212 = scalar_lea.vmem %s0, %s211
      %p213 = pneg %p56
      %p214 = pneg %p53
      %p215 = scmp.lt.s32.totalorder %s19, 1
      %s216 = scalar_select %p215, %s19, 1
      %p217 = scmp.lt.s32.totalorder %s21, 0
      %s218 = scalar_select %p217, %s21, 0
      %s219 = smul.addr %s218, 3
      %s220 = sadd.s32 1, %s219
      %s221 = smul.addr %s216, 3
      %s222 = sadd.s32 %s220, %s221
      %s223 = smul.addr %s222, 8
      %s224 = scalar_lea.vmem %s1, %s223
      %p225 = pneg %p84
      %p226 = pneg %p81
      %p227 = scmp.lt.s32.totalorder %s19, 1
      %s228 = scalar_select %p227, %s19, 1
      %p229 = scmp.lt.s32.totalorder %s21, 0
      %s230 = scalar_select %p229, %s21, 0
      %s231 = smul.addr %s230, 3
      %s232 = sadd.s32 2, %s231
      %s233 = smul.addr %s228, 3
      %s234 = sadd.s32 %s232, %s233
      %s235 = smul.addr %s234, 8
      %s236 = scalar_lea.vmem %s2, %s235
      %p237 = pneg %p112
      %p238 = pneg %p109
      %p239 = pneg %p140
      %p240 = pneg %p137
      %p241 = scmp.lt.s32.totalorder %s19, 1
      %s242 = scalar_select %p241, %s19, 1
      %p243 = scmp.lt.s32.totalorder %s20, 0
      %s244 = scalar_select %p243, %s20, 0
      %s245 = sadd.s32 %s244, %s242
      %s246 = smul.addr %s245, 8
      %s247 = scalar_lea.vmem %s3, %s246
      %p248 = scmp.lt.s32.totalorder %s19, 1
      %s249 = scalar_select %p248, %s19, 1
      %p250 = scmp.lt.s32.totalorder %s20, 0
      %s251 = scalar_select %p250, %s20, 0
      %s252 = smul.addr %s251, 3
      %s253 = smul.addr %s249, 3
      %s254 = sadd.s32 %s252, %s253
      %s255 = smul.addr %s254, 8
      %s256 = scalar_lea.vmem %s0, %s255
      %p257 = scmp.lt.s32.totalorder %s19, 1
      %s258 = scalar_select %p257, %s19, 1
      %p259 = scmp.lt.s32.totalorder %s21, 0
      %s260 = scalar_select %p259, %s21, 0
      %s261 = smul.addr %s260, 3
      %s262 = sadd.s32 1, %s261
      %s263 = smul.addr %s258, 3
      %s264 = sadd.s32 %s262, %s263
      %s265 = smul.addr %s264, 8
      %s266 = scalar_lea.vmem %s1, %s265
      %p267 = scmp.lt.s32.totalorder %s19, 1
      %s268 = scalar_select %p267, %s19, 1
      %p269 = scmp.lt.s32.totalorder %s21, 0
      %s270 = scalar_select %p269, %s21, 0
      %s271 = smul.addr %s270, 3
      %s272 = sadd.s32 2, %s271
      %s273 = smul.addr %s268, 3
      %s274 = sadd.s32 %s272, %s273
      %s275 = smul.addr %s274, 8
      %s276 = scalar_lea.vmem %s2, %s275
      %p277 = scmp.lt.s32.totalorder %s19, 1
      %s278 = scalar_select %p277, %s19, 1
      %p279 = scmp.lt.s32.totalorder %s20, 0
      %s280 = scalar_select %p279, %s20, 0
      %s281 = sadd.s32 %s280, %s278
      %s282 = smul.addr %s281, 8
      %s283 = scalar_lea.vmem %s3, %s282
      %p284 = scmp.eq.s32.totalorder %s21, 0
      // Predicated region
      $region33: #{gpt_attention_forward.5} parent=31 // pred_check
        %p285 = pneg %p284
      $region34: #{gpt_attention_forward.5} parent=31 // pred_check_branch
        %287 = sbr.rel (%p285) target = $region36
      $region35: #{gpt_attention_forward.5} parent=31 // pred_region
        %vm288 = vcmask 7168
        %289 = vst.msk [vmem:[#allocation2] sm:$0xff] %vm288, -inf
        %290 = vst.msk [vmem:[#allocation2 + $0x8] sm:$0xff] %vm288, -inf
        %291 = vst.msk [vmem:[#allocation2 + $0x10] sm:$0xff] %vm288, -inf
        %292 = vst.msk [vmem:[#allocation2 + $0x18] sm:$0xff] %vm288, -inf
        %293 = vst.msk [vmem:[#allocation3] sm:$0xff] %vm288, 0.0
        %294 = vst.msk [vmem:[#allocation3 + $0x8] sm:$0xff] %vm288, 0.0
        %295 = vst.msk [vmem:[#allocation3 + $0x10] sm:$0xff] %vm288, 0.0
        %296 = vst.msk [vmem:[#allocation3 + $0x18] sm:$0xff] %vm288, 0.0
        %vm297 = vcmask 261120
        %298 = vst.msk [vmem:[#allocation4] sm:$0xff] %vm297, 0.0
        %299 = vst.msk [vmem:[#allocation4 + $0x8] sm:$0xff] %vm297, 0.0
        %300 = vst.msk [vmem:[#allocation4 + $0x10] sm:$0xff] %vm297, 0.0
        %301 = vst.msk [vmem:[#allocation4 + $0x18] sm:$0xff] %vm297, 0.0
      $region36: #{gpt_attention_forward.5} parent=31 // pred_fallthru
        _
      %s302 = smul.u32 %s20, 8
      %s303 = smul.u32 %s21, 8
      %s304 = sadd.s32 %s302, 7
      %p305 = scmp.le.s32.totalorder %s303, %s304
      // Predicated region
      $region37: #{gpt_attention_forward.5} parent=31 // pred_check
        %p306 = pneg %p305
      $region38: #{gpt_attention_forward.5} parent=31 // pred_check_branch
        %308 = sbr.rel (%p306) target = $region40
      $region39: #{gpt_attention_forward.5} parent=31 // pred_region
        %v309 = vld [vmem:[%s256] sm:$0xff]
        %v310 = vmul.f32 %v309, 0.17677669
        %v311 = vld [vmem:[%s266] sm:$0xff]
        %v312 = vld [vmem:[%s276] sm:$0xff]
        %v313 = vlaneseq
        %v314 = vshrl.u32 %v313, 7
        %v315 = vstv %s302
        %v316 = vadd.s32 %v315, %v314
        %v317 = vlaneseq
        %v318 = vand.u32 %v317, 127
        %v319 = vstv %s303
        %v320 = vadd.s32 %v319, %v318
        %vm321 = vcmp.ge.s32.totalorder %v316, %v320
        %vm322 = vcmask 261120
        %v324 = vsel %vm322, %v310, 0
        %v327 = vsel %vm322, %v311, 0
        %329 = vmatpush.xpose.msra.mxu0 0.0
        %330 = vmatpush.xpose.msra.mxu0 0.0
        %331 = vmatpush.xpose.msra.mxu0 0.0
        %332 = vmatpush.xpose.msra.mxu0 0.0
        %333 = vmatpush.xpose.msra.mxu0 0.0
        %334 = vmatpush.xpose.msra.mxu0 0.0
        %335 = vmatpush.xpose.msra.mxu0 0.0
        %336 = vmatpush.xpose.msra.mxu0 0.0
        %337 = vmatpush.xpose.msra.mxu0 0.0
        %338 = vmatpush.xpose.msra.mxu0 0.0
        %339 = vmatpush.xpose.msra.mxu0 0.0
        %340 = vmatpush.xpose.msra.mxu0 0.0
        %341 = vmatpush.xpose.msra.mxu0 0.0
        %342 = vmatpush.xpose.msra.mxu0 0.0
        %343 = vmatpush.xpose.msra.mxu0 0.0
        %344 = vmatpush.xpose.msra.mxu0 %v327
        %345 = vmatmul.f32.gmra.mxu0 %v324
        %v346 = vpop.f32.mrf.mxu0
        %v347 = vadd.f32 0.0, %v346
        %348 = vdwg.mxu0
        %v349 = vsel %vm321, %v347, -3.4028235e+38
        %v350 = vld [vmem:[#allocation2] sm:$0xff]
        %vm351 = vcmask 64512
        %v352 = vsel %vm351, %v349, -inf
        %353 = vmax.xlane.f32.xlu0 %v352
        %v354 = vpop.xlane.xlu0 %353
        %v355 = vmax.f32 %v350, %v354
        %v356 = vsub.f32 %v350, %v355
        %v357 = vmul.f32 %v356, 1.442695
        %v358 = vpow.pop %v357
        %360 = vset.pattern.permute.xlu0 0
        %361 = vperm.xlu0 %360, %v355
        %v362 = vpop.permute.xlu0 %361
        %v364 = vsub.f32 %v349, %v362
        %v365 = vmul.f32 %v364, 1.442695
        %v366 = vpow.pop %v365
        %v367 = vld [vmem:[#allocation3] sm:$0xff]
        %v368 = vmul.f32 %v358, %v367
        %v369 = vsel %vm351, %v366, 0.0
        %370 = vadd.xlane.f32.xlu0 %v369
        %v371 = vpop.xlane.xlu0 %370
        %v372 = vadd.f32 %v368, %v371
        %vm373 = vcmask 7168
        %374 = vst.msk [vmem:[#allocation3] sm:$0xff] %vm373, %v372
        %v375 = vld [vmem:[#allocation4] sm:$0xff]
        %377 = vset.pattern.permute.xlu0 0
        %378 = vperm.xlu0 %377, %v358
        %v379 = vpop.permute.xlu0 %378
        %v381 = vmul.f32 %v379, %v375
        %v383 = vsel %vm351, %v366, 0
        %385 = vmatpush.msra.mxu0 0.0
        %386 = vmatpush.msra.mxu0 0.0
        %387 = vmatpush.msra.mxu0 0.0
        %388 = vmatpush.msra.mxu0 0.0
        %389 = vmatpush.msra.mxu0 0.0
        %390 = vmatpush.msra.mxu0 0.0
        %391 = vmatpush.msra.mxu0 0.0
        %392 = vmatpush.msra.mxu0 0.0
        %393 = vmatpush.msra.mxu0 0.0
        %394 = vmatpush.msra.mxu0 0.0
        %395 = vmatpush.msra.mxu0 0.0
        %396 = vmatpush.msra.mxu0 0.0
        %397 = vmatpush.msra.mxu0 0.0
        %398 = vmatpush.msra.mxu0 0.0
        %399 = vmatpush.msra.mxu0 0.0
        %400 = vmatpush.msra.mxu0 %v312
        %401 = vmatmul.f32.gmra.mxu0 %v383
        %v402 = vpop.f32.mrf.mxu0
        %v403 = vadd.f32 0.0, %v402
        %404 = vdwg.mxu0
        %v405 = vadd.f32 %v381, %v403
        %406 = vst.msk [vmem:[#allocation4] sm:$0xff] %vm322, %v405
        %407 = vst.msk [vmem:[#allocation2] sm:$0xff] %vm373, %v355
        %408 = vrot.lane.b32.xlu0 %v310, 96
        %v409 = vpop.permute.xlu0 %408
        %410 = vrot.lane.b32.xlu0 %v311, 96
        %v411 = vpop.permute.xlu0 %410
        %v412 = vsel %vm322, %v409, 0
        %v414 = vsel %vm322, %v411, 0
        %416 = vmatpush.xpose.msra.mxu0 0.0
        %417 = vmatpush.xpose.msra.mxu0 0.0
        %418 = vmatpush.xpose.msra.mxu0 0.0
        %419 = vmatpush.xpose.msra.mxu0 0.0
        %420 = vmatpush.xpose.msra.mxu0 0.0
        %421 = vmatpush.xpose.msra.mxu0 0.0
        %422 = vmatpush.xpose.msra.mxu0 0.0
        %423 = vmatpush.xpose.msra.mxu0 0.0
        %424 = vmatpush.xpose.msra.mxu0 0.0
        %425 = vmatpush.xpose.msra.mxu0 0.0
        %426 = vmatpush.xpose.msra.mxu0 0.0
        %427 = vmatpush.xpose.msra.mxu0 0.0
        %428 = vmatpush.xpose.msra.mxu0 0.0
        %429 = vmatpush.xpose.msra.mxu0 0.0
        %430 = vmatpush.xpose.msra.mxu0 0.0
        %431 = vmatpush.xpose.msra.mxu0 %v414
        %432 = vmatmul.f32.gmra.mxu0 %v412
        %v433 = vpop.f32.mrf.mxu0
        %v434 = vadd.f32 0.0, %v433
        %435 = vdwg.mxu0
        %v436 = vsel %vm321, %v434, -3.4028235e+38
        %s437 = scalar_lea.vmem [#allocation2], 8
        %v438 = vld [vmem:[%s437] sm:$0xff]
        %v439 = vsel %vm351, %v436, -inf
        %440 = vmax.xlane.f32.xlu0 %v439
        %v441 = vpop.xlane.xlu0 %440
        %v442 = vmax.f32 %v438, %v441
        %v443 = vsub.f32 %v438, %v442
        %v444 = vmul.f32 %v443, 1.442695
        %v445 = vpow.pop %v444
        %447 = vset.pattern.permute.xlu0 0
        %448 = vperm.xlu0 %447, %v442
        %v449 = vpop.permute.xlu0 %448
        %v451 = vsub.f32 %v436, %v449
        %v452 = vmul.f32 %v451, 1.442695
        %v453 = vpow.pop %v452
        %s454 = scalar_lea.vmem [#allocation3], 8
        %v455 = vld [vmem:[%s454] sm:$0xff]
        %v456 = vmul.f32 %v445, %v455
        %v457 = vsel %vm351, %v453, 0.0
        %458 = vadd.xlane.f32.xlu0 %v457
        %v459 = vpop.xlane.xlu0 %458
        %v460 = vadd.f32 %v456, %v459
        %461 = vst.msk [vmem:[%s454] sm:$0xff] %vm373, %v460
        %s462 = scalar_lea.vmem [#allocation4], 8
        %v463 = vld [vmem:[%s462] sm:$0xff]
        %465 = vset.pattern.permute.xlu0 0
        %466 = vperm.xlu0 %465, %v445
        %v467 = vpop.permute.xlu0 %466
        %v469 = vmul.f32 %v467, %v463
        %471 = vrot.lane.b32.xlu0 %v312, 96
        %v472 = vpop.permute.xlu0 %471
        %v475 = vsel %vm351, %v453, 0
        %477 = vmatpush.msra.mxu0 0.0
        %478 = vmatpush.msra.mxu0 0.0
        %479 = vmatpush.msra.mxu0 0.0
        %480 = vmatpush.msra.mxu0 0.0
        %481 = vmatpush.msra.mxu0 0.0
        %482 = vmatpush.msra.mxu0 0.0
        %483 = vmatpush.msra.mxu0 0.0
        %484 = vmatpush.msra.mxu0 0.0
        %485 = vmatpush.msra.mxu0 0.0
        %486 = vmatpush.msra.mxu0 0.0
        %487 = vmatpush.msra.mxu0 0.0
        %488 = vmatpush.msra.mxu0 0.0
        %489 = vmatpush.msra.mxu0 0.0
        %490 = vmatpush.msra.mxu0 0.0
        %491 = vmatpush.msra.mxu0 0.0
        %492 = vmatpush.msra.mxu0 %v472
        %493 = vmatmul.f32.gmra.mxu0 %v475
        %v494 = vpop.f32.mrf.mxu0
        %v495 = vadd.f32 0.0, %v494
        %496 = vdwg.mxu0
        %v497 = vadd.f32 %v469, %v495
        %498 = vst.msk [vmem:[%s462] sm:$0xff] %vm322, %v497
        %499 = vst.msk [vmem:[%s437] sm:$0xff] %vm373, %v442
        %500 = vrot.lane.b32.xlu0 %v310, 64
        %v501 = vpop.permute.xlu0 %500
        %502 = vrot.lane.b32.xlu0 %v311, 64
        %v503 = vpop.permute.xlu0 %502
        %v504 = vsel %vm322, %v501, 0
        %v506 = vsel %vm322, %v503, 0
        %508 = vmatpush.xpose.msra.mxu0 0.0
        %509 = vmatpush.xpose.msra.mxu0 0.0
        %510 = vmatpush.xpose.msra.mxu0 0.0
        %511 = vmatpush.xpose.msra.mxu0 0.0
        %512 = vmatpush.xpose.msra.mxu0 0.0
        %513 = vmatpush.xpose.msra.mxu0 0.0
        %514 = vmatpush.xpose.msra.mxu0 0.0
        %515 = vmatpush.xpose.msra.mxu0 0.0
        %516 = vmatpush.xpose.msra.mxu0 0.0
        %517 = vmatpush.xpose.msra.mxu0 0.0
        %518 = vmatpush.xpose.msra.mxu0 0.0
        %519 = vmatpush.xpose.msra.mxu0 0.0
        %520 = vmatpush.xpose.msra.mxu0 0.0
        %521 = vmatpush.xpose.msra.mxu0 0.0
        %522 = vmatpush.xpose.msra.mxu0 0.0
        %523 = vmatpush.xpose.msra.mxu0 %v506
        %524 = vmatmul.f32.gmra.mxu0 %v504
        %v525 = vpop.f32.mrf.mxu0
        %v526 = vadd.f32 0.0, %v525
        %527 = vdwg.mxu0
        %v528 = vsel %vm321, %v526, -3.4028235e+38
        %s529 = scalar_lea.vmem [#allocation2], 16
        %v530 = vld [vmem:[%s529] sm:$0xff]
        %v531 = vsel %vm351, %v528, -inf
        %532 = vmax.xlane.f32.xlu0 %v531
        %v533 = vpop.xlane.xlu0 %532
        %v534 = vmax.f32 %v530, %v533
        %v535 = vsub.f32 %v530, %v534
        %v536 = vmul.f32 %v535, 1.442695
        %v537 = vpow.pop %v536
        %539 = vset.pattern.permute.xlu0 0
        %540 = vperm.xlu0 %539, %v534
        %v541 = vpop.permute.xlu0 %540
        %v543 = vsub.f32 %v528, %v541
        %v544 = vmul.f32 %v543, 1.442695
        %v545 = vpow.pop %v544
        %s546 = scalar_lea.vmem [#allocation3], 16
        %v547 = vld [vmem:[%s546] sm:$0xff]
        %v548 = vmul.f32 %v537, %v547
        %v549 = vsel %vm351, %v545, 0.0
        %550 = vadd.xlane.f32.xlu0 %v549
        %v551 = vpop.xlane.xlu0 %550
        %v552 = vadd.f32 %v548, %v551
        %553 = vst.msk [vmem:[%s546] sm:$0xff] %vm373, %v552
        %s554 = scalar_lea.vmem [#allocation4], 16
        %v555 = vld [vmem:[%s554] sm:$0xff]
        %557 = vset.pattern.permute.xlu0 0
        %558 = vperm.xlu0 %557, %v537
        %v559 = vpop.permute.xlu0 %558
        %v561 = vmul.f32 %v559, %v555
        %562 = vrot.lane.b32.xlu0 %v312, 64
        %v563 = vpop.permute.xlu0 %562
        %v566 = vsel %vm351, %v545, 0
        %568 = vmatpush.msra.mxu0 0.0
        %569 = vmatpush.msra.mxu0 0.0
        %570 = vmatpush.msra.mxu0 0.0
        %571 = vmatpush.msra.mxu0 0.0
        %572 = vmatpush.msra.mxu0 0.0
        %573 = vmatpush.msra.mxu0 0.0
        %574 = vmatpush.msra.mxu0 0.0
        %575 = vmatpush.msra.mxu0 0.0
        %576 = vmatpush.msra.mxu0 0.0
        %577 = vmatpush.msra.mxu0 0.0
        %578 = vmatpush.msra.mxu0 0.0
        %579 = vmatpush.msra.mxu0 0.0
        %580 = vmatpush.msra.mxu0 0.0
        %581 = vmatpush.msra.mxu0 0.0
        %582 = vmatpush.msra.mxu0 0.0
        %583 = vmatpush.msra.mxu0 %v563
        %584 = vmatmul.f32.gmra.mxu0 %v566
        %v585 = vpop.f32.mrf.mxu0
        %v586 = vadd.f32 0.0, %v585
        %587 = vdwg.mxu0
        %v588 = vadd.f32 %v561, %v586
        %589 = vst.msk [vmem:[%s554] sm:$0xff] %vm322, %v588
        %590 = vst.msk [vmem:[%s529] sm:$0xff] %vm373, %v534
        %591 = vrot.lane.b32.xlu0 %v310, 32
        %v592 = vpop.permute.xlu0 %591
        %593 = vrot.lane.b32.xlu0 %v311, 32
        %v594 = vpop.permute.xlu0 %593
        %v595 = vsel %vm322, %v592, 0
        %v597 = vsel %vm322, %v594, 0
        %599 = vmatpush.xpose.msra.mxu0 0.0
        %600 = vmatpush.xpose.msra.mxu0 0.0
        %601 = vmatpush.xpose.msra.mxu0 0.0
        %602 = vmatpush.xpose.msra.mxu0 0.0
        %603 = vmatpush.xpose.msra.mxu0 0.0
        %604 = vmatpush.xpose.msra.mxu0 0.0
        %605 = vmatpush.xpose.msra.mxu0 0.0
        %606 = vmatpush.xpose.msra.mxu0 0.0
        %607 = vmatpush.xpose.msra.mxu0 0.0
        %608 = vmatpush.xpose.msra.mxu0 0.0
        %609 = vmatpush.xpose.msra.mxu0 0.0
        %610 = vmatpush.xpose.msra.mxu0 0.0
        %611 = vmatpush.xpose.msra.mxu0 0.0
        %612 = vmatpush.xpose.msra.mxu0 0.0
        %613 = vmatpush.xpose.msra.mxu0 0.0
        %614 = vmatpush.xpose.msra.mxu0 %v597
        %615 = vmatmul.f32.gmra.mxu0 %v595
        %v616 = vpop.f32.mrf.mxu0
        %v617 = vadd.f32 0.0, %v616
        %618 = vdwg.mxu0
        %v619 = vsel %vm321, %v617, -3.4028235e+38
        %s620 = scalar_lea.vmem [#allocation2], 24
        %v621 = vld [vmem:[%s620] sm:$0xff]
        %v622 = vsel %vm351, %v619, -inf
        %623 = vmax.xlane.f32.xlu0 %v622
        %v624 = vpop.xlane.xlu0 %623
        %v625 = vmax.f32 %v621, %v624
        %v626 = vsub.f32 %v621, %v625
        %v627 = vmul.f32 %v626, 1.442695
        %v628 = vpow.pop %v627
        %630 = vset.pattern.permute.xlu0 0
        %631 = vperm.xlu0 %630, %v625
        %v632 = vpop.permute.xlu0 %631
        %v634 = vsub.f32 %v619, %v632
        %v635 = vmul.f32 %v634, 1.442695
        %v636 = vpow.pop %v635
        %s637 = scalar_lea.vmem [#allocation3], 24
        %v638 = vld [vmem:[%s637] sm:$0xff]
        %v639 = vmul.f32 %v628, %v638
        %v640 = vsel %vm351, %v636, 0.0
        %641 = vadd.xlane.f32.xlu0 %v640
        %v642 = vpop.xlane.xlu0 %641
        %v643 = vadd.f32 %v639, %v642
        %644 = vst.msk [vmem:[%s637] sm:$0xff] %vm373, %v643
        %s645 = scalar_lea.vmem [#allocation4], 24
        %v646 = vld [vmem:[%s645] sm:$0xff]
        %648 = vset.pattern.permute.xlu0 0
        %649 = vperm.xlu0 %648, %v628
        %v650 = vpop.permute.xlu0 %649
        %v652 = vmul.f32 %v650, %v646
        %653 = vrot.lane.b32.xlu0 %v312, 32
        %v654 = vpop.permute.xlu0 %653
        %v657 = vsel %vm351, %v636, 0
        %659 = vmatpush.msra.mxu0 0.0
        %660 = vmatpush.msra.mxu0 0.0
        %661 = vmatpush.msra.mxu0 0.0
        %662 = vmatpush.msra.mxu0 0.0
        %663 = vmatpush.msra.mxu0 0.0
        %664 = vmatpush.msra.mxu0 0.0
        %665 = vmatpush.msra.mxu0 0.0
        %666 = vmatpush.msra.mxu0 0.0
        %667 = vmatpush.msra.mxu0 0.0
        %668 = vmatpush.msra.mxu0 0.0
        %669 = vmatpush.msra.mxu0 0.0
        %670 = vmatpush.msra.mxu0 0.0
        %671 = vmatpush.msra.mxu0 0.0
        %672 = vmatpush.msra.mxu0 0.0
        %673 = vmatpush.msra.mxu0 0.0
        %674 = vmatpush.msra.mxu0 %v654
        %675 = vmatmul.f32.gmra.mxu0 %v657
        %v676 = vpop.f32.mrf.mxu0
        %v677 = vadd.f32 0.0, %v676
        %678 = vdwg.mxu0
        %v679 = vadd.f32 %v652, %v677
        %680 = vst.msk [vmem:[%s645] sm:$0xff] %vm322, %v679
        %681 = vst.msk [vmem:[%s620] sm:$0xff] %vm373, %v625
      $region40: #{gpt_attention_forward.5} parent=31 // pred_fallthru
        _
      // Predicated region
      $region41: #{gpt_attention_forward.5} parent=31 // pred_check
        %p682 = pneg %p284
      $region42: #{gpt_attention_forward.5} parent=31 // pred_check_branch
        %684 = sbr.rel (%p682) target = $region44
      $region43: #{gpt_attention_forward.5} parent=31 // pred_region
        %v685 = vld [vmem:[#allocation3] sm:$0xff]
        %v686 = vrcp.pop %v685
        %v687 = vld [vmem:[#allocation4] sm:$0xff]
        %689 = vset.pattern.permute.xlu0 0
        %690 = vperm.xlu0 %689, %v686
        %v691 = vpop.permute.xlu0 %690
        %v693 = vmul.f32 %v687, %v691
        %vm694 = vcmask 261120
        %695 = vst.msk [vmem:[%s283] sm:$0xff] %vm694, %v693
        %s696 = scalar_lea.vmem [#allocation3], 8
        %v697 = vld [vmem:[%s696] sm:$0xff]
        %v698 = vrcp.pop %v697
        %s699 = scalar_lea.vmem [#allocation4], 8
        %v700 = vld [vmem:[%s699] sm:$0xff]
        %702 = vset.pattern.permute.xlu0 0
        %703 = vperm.xlu0 %702, %v698
        %v704 = vpop.permute.xlu0 %703
        %v706 = vmul.f32 %v700, %v704
        %708 = vrot.lane.b32.xlu0 %v706, 32
        %v709 = vpop.permute.xlu0 %708
        %vm711 = vcmask 523520
        %712 = vst.msk [vmem:[%s283] sm:$0xff] %vm711, %v709
        %s713 = scalar_lea.vmem [#allocation3], 16
        %v714 = vld [vmem:[%s713] sm:$0xff]
        %v715 = vrcp.pop %v714
        %s716 = scalar_lea.vmem [#allocation4], 16
        %v717 = vld [vmem:[%s716] sm:$0xff]
        %719 = vset.pattern.permute.xlu0 0
        %720 = vperm.xlu0 %719, %v715
        %v721 = vpop.permute.xlu0 %720
        %v723 = vmul.f32 %v717, %v721
        %725 = vrot.lane.b32.xlu0 %v723, 64
        %v726 = vpop.permute.xlu0 %725
        %vm728 = vcmask 785920
        %729 = vst.msk [vmem:[%s283] sm:$0xff] %vm728, %v726
        %s730 = scalar_lea.vmem [#allocation3], 24
        %v731 = vld [vmem:[%s730] sm:$0xff]
        %v732 = vrcp.pop %v731
        %s733 = scalar_lea.vmem [#allocation4], 24
        %v734 = vld [vmem:[%s733] sm:$0xff]
        %736 = vset.pattern.permute.xlu0 0
        %737 = vperm.xlu0 %736, %v732
        %v738 = vpop.permute.xlu0 %737
        %v740 = vmul.f32 %v734, %v738
        %742 = vrot.lane.b32.xlu0 %v740, 96
        %v743 = vpop.permute.xlu0 %742
        %vm745 = vcmask 1048320
        %746 = vst.msk [vmem:[%s283] sm:$0xff] %vm745, %v743
      $region44: #{gpt_attention_forward.5} parent=31 // pred_fallthru
        _
      %p747 = scmp.lt.s32.totalorder %s19, 1
      %s748 = scalar_select %p747, %s19, 1
      %p749 = scmp.lt.s32.totalorder %s20, 0
      %s750 = scalar_select %p749, %s20, 0
      %s751 = sadd.s32 %s750, %s748
      %s752 = smul.addr %s751, 8
      %s753 = scalar_lea.vmem %s3, %s752
      // Predicated region
      $region45: #{gpt_attention_forward.5} parent=31 // pred_check
        %p754 = pneg %p137
      $region46: #{gpt_attention_forward.5} parent=31 // pred_check_branch
        %756 = sbr.rel (%p754) target = $region48
      $region47: #{gpt_attention_forward.5} parent=31 // pred_region
        _
      $region48: #{gpt_attention_forward.5} parent=31 // pred_fallthru
        _
    $region32: #{gpt_attention_forward.5} parent=5 // pred_fallthru
      _
    %p757 = scmp.le.s32.totalorder 2, %s9
    // Predicated region
    $region49: #{gpt_attention_forward.5} parent=5 // pred_check
      %p758 = pneg %p757
    $region50: #{gpt_attention_forward.5} parent=5 // pred_check_branch
      %760 = sbr.rel (%p758) target = $region52
    $region51: #{gpt_attention_forward.5} parent=5 // pred_region
      %s761 = ssub.s32 %s9, 2
      // Predicated region
      $region53: #{gpt_attention_forward.5} parent=51 // pred_check
        %p762 = pneg %p143
      $region54: #{gpt_attention_forward.5} parent=51 // pred_check_branch
        %764 = sbr.rel (%p762) target = $region56
      $region55: #{gpt_attention_forward.5} parent=51 // pred_region
        %p765 = scmp.lt.s32.totalorder %s22, 1
        %s766 = scalar_select %p765, %s22, 1
        %p767 = scmp.lt.s32.totalorder %s23, 0
        %s768 = scalar_select %p767, %s23, 0
        %s769 = sadd.s32 %s768, %s766
        %s770 = smul.addr %s769, 8
        %s771 = scalar_lea.vmem %s3, %s770
      $region56: #{gpt_attention_forward.5} parent=51 // pred_fallthru
        _
    $region52: #{gpt_attention_forward.5} parent=5 // pred_fallthru
      _
  $region6: #{gpt_attention_forward.5} parent=0 // loop_footer
    %s13 = sadd.s32 1, %s9
  $region7: #{gpt_attention_forward.5} parent=0 // loop_footer_branch
    %8 = sbr.rel target = $region3
  $region8: #{gpt_attention_forward.5} parent=0 // loop_exit
    _

</llo_original>
